<compile_context>
chip_gen: v7x
topology: tpu7x:2x2x1
jax: 0.10.0
libtpu: 0.0.40
codegen_flags: <defaults>
</compile_context>

<pallas_src>
import functools

import jax
import jax.numpy as jnp
from jax.experimental import pallas as pl
from jax.experimental.pallas import tpu as pltpu


def _round_up(x, m):
    return ((x + m - 1) // m) * m


def _vmem_budget_bytes():
    """Per-tile working-set budget, derived from the chip's VMEM with headroom."""
    try:
        cap = pltpu.get_tpu_info().vmem_capacity_bytes
    except Exception:  # pragma: no cover - conservative fallback (v7x per-core VMEM)
        cap = 64 << 20
    return min(24 << 20, cap // 4)


def _pick_spatial_tile(n, c, in_bytes, *, max_lanes=1 << 17):
    """Largest lane tile fitting the VMEM budget; 128-aligned whenever n > 128."""
    cap = _round_up(c + 2, 8)
    # bytes per lane column: double-buffered input blocks (C+1 rows) + bf16 slab.
    per_lane = 2 * (c + 1) * in_bytes + cap * 2
    budget_lanes = _vmem_budget_bytes() // per_lane
    tn = min(budget_lanes, max_lanes, n)
    if n > 128:
        tn = max(128, (tn // 128) * 128)
    return int(tn)


def _lsr_gram_kernel(x_ref, y_ref, m_ref, z_ref, acc_ref, *,
                     c, cap, tn, n, tps, masked):
    """Accumulate the augmented Gram M = Z @ Z^T, Z = [X; pan; 1] (bf16 slab)."""
    t = pl.program_id(2)

    @pl.when(t == 0)
    def _():
        acc_ref[...] = jnp.zeros_like(acc_ref)
        # Hoisted constant rows: scratch persists across grid steps, so the ones
        # row and the sublane zero-padding are written once per (b, split) pass.
        z_ref[pl.ds(c + 1, 1), :] = jnp.ones((1, tn), jnp.bfloat16)
        if cap > c + 2:
            z_ref[pl.ds(c + 2, cap - (c + 2)), :] = jnp.zeros(
                (cap - (c + 2), tn), jnp.bfloat16)

    # Data rows, cast to bf16 on store: one MXU pass per K-chunk (f32 would be 3-6).
    z_ref[pl.ds(0, c), :] = x_ref[0].astype(jnp.bfloat16)
    z_ref[pl.ds(c, 1), :] = y_ref[0].astype(jnp.bfloat16)

    if masked:  # static: compiled only when the lane grid overshoots n
        s_id = pl.program_id(1)
        rem = n - (s_id * tps + t) * tn  # valid lanes in this tile (may be <= 0)

        @pl.when(rem < tn)
        def _():
            lane = jax.lax.broadcasted_iota(jnp.int32, (cap, tn), 1)
            z_ref[...] = jnp.where(lane < rem, z_ref[...], jnp.zeros_like(z_ref))

    z = z_ref[...]
    # Contract the large spatial (lane) axis on the MXU; f32 accumulation in VMEM.
    acc_ref[...] += jax.lax.dot_general(
        z, z, (((1,), (1,)), ((), ())), preferred_element_type=jnp.float32)

    @pl.when(t == tps - 1)
    def _():
        m_ref[0, 0] = acc_ref[...]   # single writeback per (batch, split)


@jax.jit
def ds_r(outputs, pan):
    """JAX/Pallas forward of Ds_R = 1 - mean_b(1 - var(pan - X@alpha)/var(pan))."""
    B, C, H, W = outputs.shape
    assert pan.shape == (B, 1, H, W), pan.shape
    n = H * W
    cap = _round_up(C + 2, 8)
    in_bytes = max(jnp.dtype(outputs.dtype).itemsize, jnp.dtype(pan.dtype).itemsize)

    tn = _pick_spatial_tile(n, C, in_bytes)
    nblocks = pl.cdiv(n, tn)
    # Small batches under-fill the batch-parallel axis on v7x's two TensorCores:
    # split the spatial reduction into S parallel partial Grams, summed below.
    S = 2 if (B < 4 and nblocks >= 2) else 1
    tps = pl.cdiv(nblocks, S)
    masked = (S * tps * tn) != n
    grid = (B, S, tps)

    x = outputs.reshape(B, C, n)   # free collapse of contiguous trailing dims
    y = pan.reshape(B, 1, n)

    def sp_idx(s, t):
        # Clamp so fully-masked overshoot tiles never index out of bounds.
        return jnp.minimum(s * tps + t, nblocks - 1)

    vmem_need = (2 * (C + 1) * tn * in_bytes    # double-buffered input blocks
                 + cap * tn * 2                 # bf16 augmented slab
                 + 4 * cap * cap * 4)           # accumulator + output block
    vmem_limit = int(min(max(vmem_need + (8 << 20), 32 << 20), 48 << 20))

    cost = pl.CostEstimate(
        flops=int(2 * B * cap * cap * (S * tps * tn)),
        transcendentals=0,
        bytes_accessed=int(B * (C + 1) * n * in_bytes + B * S * cap * cap * 4))

    m = pl.pallas_call(
        functools.partial(_lsr_gram_kernel, c=C, cap=cap, tn=tn, n=n,
                          tps=tps, masked=masked),
        out_shape=jax.ShapeDtypeStruct((B, S, cap, cap), jnp.float32),
        grid_spec=pltpu.PrefetchScalarGridSpec(
            num_scalar_prefetch=0,
            grid=grid,
            in_specs=[
                pl.BlockSpec((1, C, tn), lambda b, s, t: (b, 0, sp_idx(s, t))),
                pl.BlockSpec((1, 1, tn), lambda b, s, t: (b, 0, sp_idx(s, t))),
            ],
            out_specs=pl.BlockSpec((1, 1, cap, cap), lambda b, s, t: (b, s, 0, 0)),
            scratch_shapes=[
                pltpu.VMEM((cap, tn), jnp.bfloat16),   # augmented slab Z
                pltpu.VMEM((cap, cap), jnp.float32),   # Gram accumulator
            ],
        ),
        compiler_params=pltpu.CompilerParams(
            dimension_semantics=("parallel", "parallel", "arbitrary"),
            vmem_limit_bytes=vmem_limit,
        ),
        cost_estimate=cost,
    )(x, y)

    m = jnp.sum(m, axis=1)          # combine the S partial Grams -> (B, cap, cap)

    # Sufficient statistics from the augmented Gram matrix.
    G = m[:, :C, :C]                # (B, C, C) = X^T X
    v = m[:, :C, C]                 # (B, C)    = X^T pan
    s = m[:, :C, C + 1]             # (B, C)    = per-channel sum(X)
    syy = m[:, C, C]                # (B,)      = sum(pan^2)
    sy = m[:, C, C + 1]             # (B,)      = sum(pan)
    nf = float(n)

    # alpha: un-centered least squares (== torch.pinverse(X) @ pan for full rank).
    # Ridge-regularized solve is far cheaper than an SVD-based pinv on TPU.
    ridge = (1e-6 * jnp.einsum("bii->b", G) / C)[:, None, None] * jnp.eye(
        C, dtype=jnp.float32)
    alpha = jnp.linalg.solve(G + ridge, v[..., None])[..., 0]   # (B, C)

    # Centered statistics (exact identity) avoid cancellation of large terms in
    # var(pan - X@alpha); alpha is unchanged so semantics still match the spec.
    v_hat = v - s * (sy / nf)[:, None]
    G_hat = G - s[:, :, None] * s[:, None, :] / nf
    syy_hat = syy - sy * sy / nf

    var_err = (syy_hat
               - 2.0 * jnp.einsum("bc,bc->b", alpha, v_hat)
               + jnp.einsum("bc,bcd,bd->b", alpha, G_hat, alpha))
    var_pan = syy_hat               # 1/(n-1) factors cancel in the ratio
    cd = 1.0 - var_err / var_pan    # (B,) == LSR(outputs, pan)
    return 1.0 - jnp.mean(cd)       # Ds_R


def _reference(outputs, pan):
    """Pure-JAX mirror of the PyTorch module (f32; TPU has no f64)."""
    B, C, H, W = outputs.shape
    of = outputs.astype(jnp.float32)
    pf = pan.astype(jnp.float32)
    X = jnp.swapaxes(of.reshape(B, C, H * W), 1, 2)   # (B, N, C)
    yv = jnp.swapaxes(pf.reshape(B, 1, H * W), 1, 2)  # (B, N, 1)
    alpha = jnp.linalg.pinv(X) @ yv                   # (B, C, 1)
    i_r = jnp.sum(of * alpha[:, :, :, None], axis=1, keepdims=True)  # (B,1,H,W)
    err = pf - i_r
    var_err = jnp.var(err.reshape(B, -1), axis=1, ddof=1)
    var_pan = jnp.var(pf.reshape(B, -1), axis=1, ddof=1)
    cd = 1.0 - var_err / var_pan
    return 1.0 - jnp.mean(cd)


if __name__ == "__main__":
    key = jax.random.PRNGKey(0)
    k1, k2, k3, k4 = jax.random.split(key, 4)

    # Main case: B=2, C=4, 16x16 (lane-aligned, single spatial tile per batch).
    B, C, H, W = 2, 4, 16, 16
    outputs = jax.random.normal(k1, (B, C, H, W), dtype=jnp.float32)
    noise = jax.random.normal(k2, (B, 1, H, W), dtype=jnp.float32)
    pan = jnp.mean(outputs, axis=1, keepdims=True) + 0.5 * noise

    out = jax.block_until_ready(ds_r(outputs, pan))
    ref = jax.block_until_ready(_reference(outputs, pan))
    assert bool(jnp.isfinite(out)), out
    # bf16 MXU operands (f32 accumulate) vs the f32 pinv reference -> ~1e-4 drift.
    assert abs(float(out) - float(ref)) < 2e-3, (float(out), float(ref))

    # Ragged case: N = 10*13 = 130 exercises the cdiv grid + lane masking and the
    # 2-way TensorCore split of the spatial reduction (small batch path).
    B2, C2, H2, W2 = 1, 5, 10, 13
    outputs2 = jax.random.normal(k3, (B2, C2, H2, W2), dtype=jnp.float32)
    noise2 = jax.random.normal(k4, (B2, 1, H2, W2), dtype=jnp.float32)
    pan2 = jnp.mean(outputs2, axis=1, keepdims=True) + 0.5 * noise2

    out2 = jax.block_until_ready(ds_r(outputs2, pan2))
    ref2 = jax.block_until_ready(_reference(outputs2, pan2))
    assert bool(jnp.isfinite(out2)), out2
    assert abs(float(out2) - float(ref2)) < 2e-3, (float(out2), float(ref2))

    print("KERNEL_OK")
</pallas_src>

<mosaic_0001>
module attributes {stable_mosaic.version = 11 : i64} {
  func.func @_lsr_gram_kernel(%arg0: i32, %arg1: i32, %arg2: i32, %arg3: memref<1x4x256xf32, #tpu.memory_space<vmem>>, %arg4: memref<1x1x256xf32, #tpu.memory_space<vmem>>, %arg5: memref<1x1x8x8xf32, #tpu.memory_space<vmem>>, %arg6: memref<8x256xbf16, #tpu.memory_space<vmem>>, %arg7: memref<8x8xf32, #tpu.memory_space<vmem>>) attributes {dimension_semantics = [#tpu.dimension_semantics<parallel>, #tpu.dimension_semantics<parallel>, #tpu.dimension_semantics<arbitrary>], iteration_bounds = array<i64: 2, 1, 1>, scalar_prefetch = 0 : i64, scratch_operands = 2 : i64, tpu.core_type = #tpu.core_type<tc>, window_params = [{transform_indices = @transform_0, window_bounds = array<i64: 1, 4, 256>}, {transform_indices = @transform_1, window_bounds = array<i64: 1, 1, 256>}, {transform_indices = @transform_2, window_bounds = array<i64: 1, 1, 8, 8>}]} {
    %c0_i32 = arith.constant 0 : i32
    %0 = arith.cmpi eq, %arg2, %c0_i32 : i32
    %1 = arith.extui %0 : i1 to i32
    %c0_i32_0 = arith.constant 0 : i32
    %2 = arith.cmpi ne, %1, %c0_i32_0 : i32
    scf.if %2 {
      %cst_17 = arith.constant 0.000000e+00 : f32
      %19 = vector.broadcast %cst_17 : f32 to vector<8x8xf32>
      %c0_18 = arith.constant 0 : index
      %c0_19 = arith.constant 0 : index
      %20 = vector.load %arg7[%c0_18, %c0_19] : memref<8x8xf32, #tpu.memory_space<vmem>>, vector<8x8xf32>
      tpu.vector_store %arg7[%c0_18, %c0_19], %19 {strides = array<i32>} : memref<8x8xf32, #tpu.memory_space<vmem>>, vector<8x8xf32>,
      %cst_20 = arith.constant 1.000000e+00 : bf16
      %21 = vector.broadcast %cst_20 : bf16 to vector<1x256xbf16>
      %c5 = arith.constant 5 : index
      %c0_21 = arith.constant 0 : index
      %22 = vector.load %arg6[%c5, %c0_21] : memref<8x256xbf16, #tpu.memory_space<vmem>>, vector<1x256xbf16>
      tpu.vector_store %arg6[%c5, %c0_21], %21 {strides = array<i32>} : memref<8x256xbf16, #tpu.memory_space<vmem>>, vector<1x256xbf16>,
      %cst_22 = arith.constant 0.000000e+00 : bf16
      %23 = vector.broadcast %cst_22 : bf16 to vector<2x256xbf16>
      %c6 = arith.constant 6 : index
      %c0_23 = arith.constant 0 : index
      %24 = vector.load %arg6[%c6, %c0_23] : memref<8x256xbf16, #tpu.memory_space<vmem>>, vector<2x256xbf16>
      tpu.vector_store %arg6[%c6, %c0_23], %23 {strides = array<i32>} : memref<8x256xbf16, #tpu.memory_space<vmem>>, vector<2x256xbf16>,
    } else {
    }
    %c0 = arith.constant 0 : index
    %c0_1 = arith.constant 0 : index
    %c0_2 = arith.constant 0 : index
    %3 = vector.load %arg3[%c0, %c0_1, %c0_2] : memref<1x4x256xf32, #tpu.memory_space<vmem>>, vector<1x4x256xf32>
    %4 = vector.shape_cast %3 : vector<1x4x256xf32> to vector<4x256xf32>
    %5 = arith.truncf %4 : vector<4x256xf32> to vector<4x256xbf16>
    %c0_3 = arith.constant 0 : index
    %c0_4 = arith.constant 0 : index
    %6 = vector.load %arg6[%c0_3, %c0_4] : memref<8x256xbf16, #tpu.memory_space<vmem>>, vector<4x256xbf16>
    tpu.vector_store %arg6[%c0_3, %c0_4], %5 {strides = array<i32>} : memref<8x256xbf16, #tpu.memory_space<vmem>>, vector<4x256xbf16>,
    %c0_5 = arith.constant 0 : index
    %c0_6 = arith.constant 0 : index
    %c0_7 = arith.constant 0 : index
    %7 = vector.load %arg4[%c0_5, %c0_6, %c0_7] : memref<1x1x256xf32, #tpu.memory_space<vmem>>, vector<1x1x256xf32>
    %8 = vector.shape_cast %7 : vector<1x1x256xf32> to vector<1x256xf32>
    %9 = arith.truncf %8 : vector<1x256xf32> to vector<1x256xbf16>
    %c4 = arith.constant 4 : index
    %c0_8 = arith.constant 0 : index
    %10 = vector.load %arg6[%c4, %c0_8] : memref<8x256xbf16, #tpu.memory_space<vmem>>, vector<1x256xbf16>
    tpu.vector_store %arg6[%c4, %c0_8], %9 {strides = array<i32>} : memref<8x256xbf16, #tpu.memory_space<vmem>>, vector<1x256xbf16>,
    %c0_9 = arith.constant 0 : index
    %c0_10 = arith.constant 0 : index
    %11 = vector.load %arg6[%c0_9, %c0_10] : memref<8x256xbf16, #tpu.memory_space<vmem>>, vector<8x256xbf16>
    %c0_11 = arith.constant 0 : index
    %c0_12 = arith.constant 0 : index
    %12 = vector.load %arg7[%c0_11, %c0_12] : memref<8x8xf32, #tpu.memory_space<vmem>>, vector<8x8xf32>
    %cst = arith.constant dense<0.000000e+00> : vector<8x8xf32>
    %13 = tpu.matmul %11, %11, %cst {dimension_numbers = #tpu.dot_dimension_numbers<[1], [1], [0], [0], [0, 0, 1, 0], [], []>} : vector<8x256xbf16>, vector<8x256xbf16>, vector<8x8xf32> -> vector<8x8xf32>
    %14 = arith.addf %12, %13 : vector<8x8xf32>
    %c0_13 = arith.constant 0 : index
    %c0_14 = arith.constant 0 : index
    %15 = vector.load %arg7[%c0_13, %c0_14] : memref<8x8xf32, #tpu.memory_space<vmem>>, vector<8x8xf32>
    tpu.vector_store %arg7[%c0_13, %c0_14], %14 {strides = array<i32>} : memref<8x8xf32, #tpu.memory_space<vmem>>, vector<8x8xf32>,
    %c0_i32_15 = arith.constant 0 : i32
    %16 = arith.cmpi eq, %arg2, %c0_i32_15 : i32
    %17 = arith.extui %16 : i1 to i32
    %c0_i32_16 = arith.constant 0 : i32
    %18 = arith.cmpi ne, %17, %c0_i32_16 : i32
    scf.if %18 {
      %c0_17 = arith.constant 0 : index
      %c0_18 = arith.constant 0 : index
      %19 = vector.load %arg7[%c0_17, %c0_18] : memref<8x8xf32, #tpu.memory_space<vmem>>, vector<8x8xf32>
      %c0_19 = arith.constant 0 : index
      %c0_20 = arith.constant 0 : index
      %c0_21 = arith.constant 0 : index
      %c0_22 = arith.constant 0 : index
      %20 = vector.load %arg5[%c0_19, %c0_20, %c0_21, %c0_22] : memref<1x1x8x8xf32, #tpu.memory_space<vmem>>, vector<1x1x8x8xf32>
      %21 = vector.shape_cast %20 : vector<1x1x8x8xf32> to vector<8x8xf32>
      %22 = vector.shape_cast %19 : vector<8x8xf32> to vector<1x1x8x8xf32>
      tpu.vector_store %arg5[%c0_19, %c0_20, %c0_21, %c0_22], %22 {strides = array<i32>} : memref<1x1x8x8xf32, #tpu.memory_space<vmem>>, vector<1x1x8x8xf32>,
    } else {
    }
    return
  }
  func.func @transform_0(%arg0: i32, %arg1: i32, %arg2: i32) -> (i32, i32, i32) {
    %c1_i32 = arith.constant 1 : i32
    %0 = arith.muli %arg1, %c1_i32 : i32
    %1 = arith.addi %0, %arg2 : i32
    %c0_i32 = arith.constant 0 : i32
    %2 = arith.minsi %1, %c0_i32 : i32
    %c0_i32_0 = arith.constant 0 : i32
    %c0_i32_1 = arith.constant 0 : i32
    return %arg0, %c0_i32_0, %2 : i32, i32, i32
  }
  func.func @transform_1(%arg0: i32, %arg1: i32, %arg2: i32) -> (i32, i32, i32) {
    %c1_i32 = arith.constant 1 : i32
    %0 = arith.muli %arg1, %c1_i32 : i32
    %1 = arith.addi %0, %arg2 : i32
    %c0_i32 = arith.constant 0 : i32
    %2 = arith.minsi %1, %c0_i32 : i32
    %c0_i32_0 = arith.constant 0 : i32
    %c0_i32_1 = arith.constant 0 : i32
    return %arg0, %c0_i32_0, %2 : i32, i32, i32
  }
  func.func @transform_2(%arg0: i32, %arg1: i32, %arg2: i32) -> (i32, i32, i32, i32) {
    %c0_i32 = arith.constant 0 : i32
    %c0_i32_0 = arith.constant 0 : i32
    %c0_i32_1 = arith.constant 0 : i32
    return %arg0, %arg1, %c0_i32, %c0_i32_0 : i32, i32, i32, i32
  }
}

</mosaic_0001>

<llo_original>
// kernel: custom-call.8
$region0: #{custom-call.8}
  %s0 = inlined_call_operand.vmem [shape: f32[2,4,4], index: 0, kind: input, shape index: {}]
  %s1 = inlined_call_operand.vmem [shape: f32[2,4,4], index: 1, kind: output, shape index: {0}]
  %s2 = inlined_call_operand.hbm [shape: s32[2,4], index: 2, kind: output, shape index: {1}]
  %s3 = inlined_call_operand.vmem [shape: s32[2,4], index: 3, kind: output, shape index: {2}]
  %4 = xla_tuple %s1, %s2, %s3
  $region1: #{custom-call.8} parent=0
    #allocation0 [shape = 'u8[4096]{0}', space=vmem, size = 0x1000, scoped, tag = 'operand span for operand 0']
    #allocation1 [shape = 'u8[4096]{0}', space=vmem, size = 0x1000, scoped, tag = 'packed  for operand 0']
    #allocation2 [shape = 'u8[4096]{0}', space=vmem, size = 0x1000, scoped, tag = 'operand span for operand 1']
    #allocation3 [shape = 'u8[4096]{0}', space=vmem, size = 0x1000, scoped, tag = 'packed  for operand 1']
    #allocation4 [shape = 'u8[4096]{0}', space=vmem, size = 0x1000, scoped, tag = 'operand span for operand 2']
    #allocation5 [shape = 'u8[2048]{0}', space=vmem, size = 0x800, scoped, tag = 'packed  for operand 2']
    #allocation6 [shape = 's32[2]{0}', space=sflag, size = 0x8, scoped, tag = 'scoped memory for custom-call.8']
    #allocation7 [shape = 'u8[4096]{0}', space=vmem, size = 0x1000, scoped, tag = 'operand span for operand 3']
    #allocation8 [shape = 'u8[2048]{0}', space=vmem, size = 0x800, scoped, tag = 'packed  for operand 3']
    %5 = vsyncpa [#allocation6], 0
    %s6 = scalar_lea.sflag [#allocation6], 1
    %7 = vsyncpa %s6, 0
    loop: start=0, step=1, limit=4
    $region2: #{custom-call.8} parent=1 // loop_pre_header
      _
    $region3: #{custom-call.8} parent=1 // loop_header
      %s9 = sphi 0, %s13
      %p10 = scmp.ge.s32.totalorder %s9, 4
      %s21 = sphi 0, %s23
      %s24 = sphi 0, %s21
      %s25 = sphi 0, %s24
      %s41 = sphi 0, %s25
      %s49 = sphi 0, %s51
      %s52 = sphi 0, %s49
      %s53 = sphi 0, %s52
      %s69 = sphi 0, %s53
    $region4: #{custom-call.8} parent=1 // loop_header_branch
      %12 = sbr.rel (%p10) target = $region8
    $region5: #{custom-call.8} parent=1 // loop_body
      %s14 = ssub.s32 %s9, 1
      %s15 = ssub.s32 %s9, 2
      %s16 = sadd.s32 %s9, 1
      %s17 = sshrl.u32 %s9, 3
      %s18 = sshrl.u32 %s16, 3
      %s19 = ssub.s32 %s17, %s18
      %p20 = scmp.eq.s32.totalorder %s19, 0
      %s22 = sadd.s32 %s21, 1
      %s23 = scalar_select %p20, %s21, %s22
      %p26 = pneg %p20
      %p27 = scmp.eq.s32.totalorder %s9, 1
      %p28 = por %p26, %p27
      %p29 = scmp.ne.s32.totalorder %s21, %s24
      %p30 = scmp.eq.s32.totalorder %s9, 0
      %p31 = por %p29, %p30
      %p32 = scmp.ne.s32.totalorder %s21, %s24
      %p33 = scmp.eq.s32.totalorder %s14, 1
      %p34 = por %p32, %p33
      %p35 = scmp.ne.s32.totalorder %s24, %s25
      %p36 = scmp.eq.s32.totalorder %s14, 0
      %p37 = por %p35, %p36
      %p38 = scmp.ne.s32.totalorder %s24, %s25
      %p39 = scmp.eq.s32.totalorder %s15, 1
      %p40 = por %p38, %p39
      %p42 = scmp.ne.s32.totalorder %s25, %s41
      %p43 = scmp.eq.s32.totalorder %s15, 0
      %p44 = por %p42, %p43
      %s45 = sshrl.u32 %s9, 3
      %s46 = sshrl.u32 %s16, 3
      %s47 = ssub.s32 %s45, %s46
      %p48 = scmp.eq.s32.totalorder %s47, 0
      %s50 = sadd.s32 %s49, 1
      %s51 = scalar_select %p48, %s49, %s50
      %p54 = pneg %p48
      %p55 = scmp.eq.s32.totalorder %s9, 1
      %p56 = por %p54, %p55
      %p57 = scmp.ne.s32.totalorder %s49, %s52
      %p58 = scmp.eq.s32.totalorder %s9, 0
      %p59 = por %p57, %p58
      %p60 = scmp.ne.s32.totalorder %s49, %s52
      %p61 = scmp.eq.s32.totalorder %s14, 1
      %p62 = por %p60, %p61
      %p63 = scmp.ne.s32.totalorder %s52, %s53
      %p64 = scmp.eq.s32.totalorder %s14, 0
      %p65 = por %p63, %p64
      %p66 = scmp.ne.s32.totalorder %s52, %s53
      %p67 = scmp.eq.s32.totalorder %s15, 1
      %p68 = por %p66, %p67
      %p70 = scmp.ne.s32.totalorder %s53, %s69
      %p71 = scmp.eq.s32.totalorder %s15, 0
      %p72 = por %p70, %p71
      %p73 = scmp.le.s32.totalorder 1, %s9
      %p74 = scmp.lt.s32.totalorder %s9, 3
      %p75 = pnand %p73, %p74
      %p76 = pneg %p75
      // Predicated region
      $region9: #{custom-call.8} parent=5 // pred_check
        _
      $region10: #{custom-call.8} parent=5 // pred_check_branch
        %78 = sbr.rel (%p75) target = $region12
      $region11: #{custom-call.8} parent=5 // pred_region
        %s79 = ssub.s32 %s9, 1
      $region12: #{custom-call.8} parent=5 // pred_fallthru
        _
      %p80 = scmp.lt.s32.totalorder %s9, 2
      // Predicated region
      $region13: #{custom-call.8} parent=5 // pred_check
        %p81 = pneg %p80
      $region14: #{custom-call.8} parent=5 // pred_check_branch
        %83 = sbr.rel (%p81) target = $region16
      $region15: #{custom-call.8} parent=5 // pred_region
        %s84 = sand.u32 %s9, 1
        %s85 = sand.u32 %s9, 1
        %s86 = smul.addr %s85, 4
        %s87 = scalar_lea.vmem [#allocation1], %s86
        %s88 = smul.addr %s9, 4
        %s89 = scalar_lea.vmem %s0, %s88
        // Predicated region
        $region17: #{custom-call.8} parent=15 // pred_check
          _
        $region18: #{custom-call.8} parent=15 // pred_check_branch
          %91 = sbr.rel (0) target = $region20
        $region19: #{custom-call.8} parent=15 // pred_region
          // Predicated region
          $region21: #{custom-call.8} parent=19 // pred_check
            _
          $region22: #{custom-call.8} parent=19 // pred_check_branch
            %93 = sbr.rel target = $region24
          $region23: #{custom-call.8} parent=19 // pred_region
            // Predicated region
            $region36: #{custom-call.8} parent=23 // pred_check
              _
            $region37: #{custom-call.8} parent=23 // pred_check_branch
              %108 = sbr.rel (0) target = $region39
            $region38: #{custom-call.8} parent=23 // pred_region
              loop: start=0, step=1, limit=1
              $region40: #{custom-call.8} parent=38 // loop_pre_header
                _
              $region41: #{custom-call.8} parent=38 // loop_header
                %s111 = sphi 0, %s115
                %p112 = scmp.ge.s32.totalorder %s111, 1
                %s116 = sphi %s89, %s89
                %s117 = sphi %s87, %s87
              $region42: #{custom-call.8} parent=38 // loop_header_branch
                %114 = sbr.rel (%p112) target = $region46
              $region43: #{custom-call.8} parent=38 // loop_body
                %v118 = vld [vmem:[%s116] sm:$0xf]
                %119 = vst [vmem:[%s117] sm:$0xf] %v118
              $region44: #{custom-call.8} parent=38 // loop_footer
                %s115 = sadd.s32 1, %s111
              $region45: #{custom-call.8} parent=38 // loop_footer_branch
                %110 = sbr.rel target = $region41
              $region46: #{custom-call.8} parent=38 // loop_exit
                _
            $region39: #{custom-call.8} parent=23 // pred_fallthru
              _
          $region24: #{custom-call.8} parent=19 // pred_fallthru
            _
          // Predicated region
          $region25: #{custom-call.8} parent=19 // pred_check
            _
          $region26: #{custom-call.8} parent=19 // pred_check_branch
            %95 = sbr.rel (0) target = $region28
          $region27: #{custom-call.8} parent=19 // pred_region
            loop: start=0, step=1, limit=1
            $region29: #{custom-call.8} parent=27 // loop_pre_header
              _
            $region30: #{custom-call.8} parent=27 // loop_header
              %s98 = sphi 0, %s102
              %p99 = scmp.ge.s32.totalorder %s98, 1
              %s103 = sphi %s89, %s89
              %s104 = sphi %s87, %s87
            $region31: #{custom-call.8} parent=27 // loop_header_branch
              %101 = sbr.rel (%p99) target = $region35
            $region32: #{custom-call.8} parent=27 // loop_body
              %v105 = vld [vmem:[%s103] sm:$0xf]
              %106 = vst [vmem:[%s104] sm:$0xf] %v105
            $region33: #{custom-call.8} parent=27 // loop_footer
              %s102 = sadd.s32 1, %s98
            $region34: #{custom-call.8} parent=27 // loop_footer_branch
              %97 = sbr.rel target = $region30
            $region35: #{custom-call.8} parent=27 // loop_exit
              _
          $region28: #{custom-call.8} parent=19 // pred_fallthru
            _
        $region20: #{custom-call.8} parent=15 // pred_fallthru
          _
        %120 = vnop
      $region16: #{custom-call.8} parent=5 // pred_fallthru
        _
      %p121 = scmp.le.s32.totalorder 1, %s9
      %p122 = scmp.lt.s32.totalorder %s9, 3
      %p123 = pnand %p121, %p122
      %p124 = pneg %p123
      // Predicated region
      $region47: #{custom-call.8} parent=5 // pred_check
        _
      $region48: #{custom-call.8} parent=5 // pred_check_branch
        %126 = sbr.rel (%p123) target = $region50
      $region49: #{custom-call.8} parent=5 // pred_region
        #allocation9 [shape = 's32[4,128]{1,0}', space=vmem, size = 0x1000, scoped, tag = 'scratch for permutations']
        %s127 = ssub.s32 %s9, 1
        %s128 = sand.u32 %s14, 1
        %s129 = sand.u32 %s14, 1
        %s130 = smul.addr %s129, 4
        %s131 = scalar_lea.vmem [#allocation1], %s130
        %s132 = sand.u32 %s14, 1
        %s133 = sand.u32 %s14, 1
        %s134 = smul.addr %s133, 4
        %s135 = scalar_lea.vmem [#allocation1], %s134
        %s136 = sand.u32 %s14, 1
        %s137 = sand.u32 %s14, 1
        %s138 = smul.addr %s137, 4
        %s139 = scalar_lea.vmem [#allocation3], %s138
        %p140 = pneg %p37
        %p141 = pneg %p34
        %s142 = sand.u32 %s24, 1
        %s143 = scalar_lea.sflag [#allocation6], %s142
        %s144 = sand.u32 %s24, 1
        %s145 = smul.addr %s144, 2
        %s146 = scalar_lea.vmem [#allocation5], %s145
        %p147 = pneg %p65
        %p148 = pneg %p62
        %s149 = sand.u32 %s52, 1
        %s150 = sand.u32 %s52, 1
        %s151 = smul.addr %s150, 2
        %s152 = scalar_lea.vmem [#allocation8], %s151
        %s154 = sshllo.u32 0, 4
        %v155 = vld [vmem:[%s135] sm:%s154]
        %156 = vst [vmem:[#allocation0] sm:%s154] %v155
        %s157 = sshrl.u32 %s14, 3
        %s158 = sshrl.u32 %s14, 3
        %v159 = vld [vmem:[#allocation0] sm:$0xff]
        %160 = vst [vmem:[#allocation2] sm:$0xff] %v159
        %s161 = sand.u32 %s14, 7
        %s162 = scalar_lea.vmem [#allocation4], %s161
        %s163 = sand.u32 %s14, 7
        %s164 = scalar_lea.vmem [#allocation7], %s163
        %165 = vst [vmem:[%s162] sm:$0x1] 0
        %v166 = vlaneseq
        %v167 = vshrl.u32 %v166, 7
        %v168 = vmov %v167
        %170 = vst [vmem:[#allocation9] sm:$0xff] %v168
        loop: start=0, step=1, limit=4
        $region52: #{custom-call.8} parent=49 // loop_pre_header
          _
        $region53: #{custom-call.8} parent=49 // loop_header
          %s172 = sphi 0, %s176
          %p173 = scmp.ge.s32.totalorder %s172, 4
        $region54: #{custom-call.8} parent=49 // loop_header_branch
          %175 = sbr.rel (%p173) target = $region58
        $region55: #{custom-call.8} parent=49 // loop_body
          %v177 = vstv %s172
          %v178 = vlaneseq
          %v179 = vshrl.u32 %v178, 7
          %v180 = vmov %v179
          %v181 = vld [vmem:[#allocation2] sm:$0xff]
          %v182 = vand.u32 2147483647, %v181
          %v184 = vstv %s172
          %vm185 = vcmp.ge.s32.totalorder %v180, %v184
          %vm186 = vcmp.lt.s32.totalorder %v180, 4
          %vm187 = vmand %vm185, %vm186
          %vm188 = vcmp.lt.f32.partialorder -inf, %v182
          %vm189 = vmand %vm187, %vm188
          %v190 = vsel %vm189, %v180, %v177
          %v191 = vsel %vm189, %v182, -inf
          %v192 = vrot.slane %v191, 1
          %v193 = vrot.slane %v190, 1
          %vm194 = vcmp.ge.f32.partialorder %v192, %v191
          %v195 = vsel %vm194, %v192, %v191
          %v196 = vsel %vm194, %v193, %v190
          %v197 = vrot.slane %v192, 1
          %v198 = vrot.slane %v193, 1
          %vm199 = vcmp.ge.f32.partialorder %v197, %v195
          %v200 = vsel %vm199, %v197, %v195
          %v201 = vsel %vm199, %v198, %v196
          %v202 = vrot.slane %v197, 1
          %v203 = vrot.slane %v198, 1
          %vm204 = vcmp.ge.f32.partialorder %v202, %v200
          %v205 = vsel %vm204, %v202, %v200
          %v206 = vsel %vm204, %v203, %v201
          %v207 = vrot.slane %v202, 1
          %v208 = vrot.slane %v203, 1
          %vm209 = vcmp.ge.f32.partialorder %v207, %v205
          %v210 = vsel %vm209, %v207, %v205
          %v211 = vsel %vm209, %v208, %v206
          %v212 = vrot.slane %v207, 1
          %v213 = vrot.slane %v208, 1
          %vm214 = vcmp.ge.f32.partialorder %v212, %v210
          %v215 = vsel %vm214, %v212, %v210
          %v216 = vsel %vm214, %v213, %v211
          %v217 = vrot.slane %v212, 1
          %v218 = vrot.slane %v213, 1
          %vm219 = vcmp.ge.f32.partialorder %v217, %v215
          %v220 = vsel %vm219, %v217, %v215
          %v221 = vsel %vm219, %v218, %v216
          %v222 = vrot.slane %v217, 1
          %v223 = vrot.slane %v218, 1
          %vm224 = vcmp.ge.f32.partialorder %v222, %v220
          %v225 = vsel %vm224, %v222, %v220
          %v226 = vsel %vm224, %v223, %v221
          %s227 = ssub.s32 128, %s172
          %228 = vrot.lane.b32.xlu0 %v226, %s227
          %v229 = vpop.permute.xlu0 %228
          %s230 = vtos %v229
          %v231 = vstv %s172
          %v232 = vlaneseq
          %v233 = vand.u32 %v232, 127
          %vm234 = vcmp.eq.s32.totalorder %v233, %v231
          %v235 = vstv %s230
          %v236 = vld [vmem:[%s162] ss:$0 sm:$0xff]
          %v237 = vsel %vm234, %v235, %v236
          %238 = vst [vmem:[%s162] sm:$0x1] %v237
          %s239 = scalar_lea.vmem [#allocation2], %s172
          %s240 = scalar_lea.vmem [#allocation2], %s230
          %v241 = vld [vmem:[%s239] ss:$0 sm:$0xff]
          %v242 = vld [vmem:[%s240] ss:$0 sm:$0xff]
          %243 = vst [vmem:[%s240] sm:$0x1] %v241
          %244 = vst [vmem:[%s239] sm:$0x1] %v242
          %s245 = scalar_lea.vmem [#allocation9], %s172
          %s246 = scalar_lea.vmem [#allocation9], %s230
          %v247 = vld [vmem:[%s245] ss:$0 sm:$0xff]
          %v248 = vld [vmem:[%s246] ss:$0 sm:$0xff]
          %249 = vst [vmem:[%s246] sm:$0x1] %v247
          %250 = vst [vmem:[%s245] sm:$0x1] %v248
          %vm251 = vcmp.ne.f32.partialorder %v242, 0.0
          %vm252 = vmand %vm234, %vm251
          %v253 = vsel %vm252, %v242, 1.0
          %v254 = vlaneseq
          %v255 = vand.u32 %v254, 127
          %v256 = vstv %s172
          %vm257 = vcmp.gt.s32.totalorder %v255, %v256
          %v258 = vsel %vm257, %v242, 0.0
          %v259 = vlaneseq
          %v260 = vshrl.u32 %v259, 7
          %v261 = vmov %v260
          %v262 = vld [vmem:[#allocation2] sm:$0xff]
          %v264 = vstv %s172
          %vm265 = vcmp.gt.s32.totalorder %v261, %v264
          %v266 = vsel %vm265, %v253, 1.0
          %v267 = vrcp.pop %v266
          %v268 = vmul.f32 %v262, %v267
          %vm269 = vmand %vm265, %vm234
          %v270 = vsel %vm269, %v268, 0.0
          %271 = vadd.xlane.f32.xlu0 %v270
          %v272 = vpop.xlane.xlu0 %271
          %v273 = vmul.f32 %v272, %v258
          %v274 = vsub.f32 %v268, %v273
          %275 = vst [vmem:[#allocation2] sm:$0xff] %v274
        $region56: #{custom-call.8} parent=49 // loop_footer
          %s176 = sadd.s32 1, %s172
        $region57: #{custom-call.8} parent=49 // loop_footer_branch
          %171 = sbr.rel target = $region53
        $region58: #{custom-call.8} parent=49 // loop_exit
          _
        %v276 = vld [vmem:[#allocation9] sm:$0xff]
        %s277 = scalar_lea.vmem [#allocation9], 8
        %s278 = scalar_lea.vmem [#allocation9], 16
        %s279 = scalar_lea.vmem [#allocation9], 24
        %s280 = scalar_lea.vmem [#allocation9], 32
        %s281 = scalar_lea.vmem [#allocation9], 40
        %s282 = scalar_lea.vmem [#allocation9], 48
        %s283 = scalar_lea.vmem [#allocation9], 56
        %s284 = scalar_lea.vmem [#allocation9], 64
        %s285 = scalar_lea.vmem [#allocation9], 72
        %s286 = scalar_lea.vmem [#allocation9], 80
        %s287 = scalar_lea.vmem [#allocation9], 88
        %s288 = scalar_lea.vmem [#allocation9], 96
        %s289 = scalar_lea.vmem [#allocation9], 104
        %s290 = scalar_lea.vmem [#allocation9], 112
        %s291 = scalar_lea.vmem [#allocation9], 120
        %292 = vxpose.xlu0.b32.start [1/16] %v276, 128
        %293 = vxpose.xlu0.b32.cont [2/16] 0, 128
        %294 = vxpose.xlu0.b32.cont [3/16] 0, 128
        %295 = vxpose.xlu0.b32.cont [4/16] 0, 128
        %296 = vxpose.xlu0.b32.cont [5/16] 0, 128
        %297 = vxpose.xlu0.b32.cont [6/16] 0, 128
        %298 = vxpose.xlu0.b32.cont [7/16] 0, 128
        %299 = vxpose.xlu0.b32.cont [8/16] 0, 128
        %300 = vxpose.xlu0.b32.cont [9/16] 0, 128
        %301 = vxpose.xlu0.b32.cont [10/16] 0, 128
        %302 = vxpose.xlu0.b32.cont [11/16] 0, 128
        %303 = vxpose.xlu0.b32.cont [12/16] 0, 128
        %304 = vxpose.xlu0.b32.cont [13/16] 0, 128
        %305 = vxpose.xlu0.b32.cont [14/16] 0, 128
        %306 = vxpose.xlu0.b32.cont [15/16] 0, 128
        %307 = vxpose.xlu0.b32.end [16/16] 0, 128
        %v308 = vpop.trf.xlu0
        %v309 = vpop.trf.xlu0
        %v310 = vpop.trf.xlu0
        %v311 = vpop.trf.xlu0
        %v312 = vpop.trf.xlu0
        %v313 = vpop.trf.xlu0
        %v314 = vpop.trf.xlu0
        %v315 = vpop.trf.xlu0
        %v316 = vpop.trf.xlu0
        %v317 = vpop.trf.xlu0
        %v318 = vpop.trf.xlu0
        %v319 = vpop.trf.xlu0
        %v320 = vpop.trf.xlu0
        %v321 = vpop.trf.xlu0
        %v322 = vpop.trf.xlu0
        %v323 = vpop.trf.xlu0
        %324 = vst [vmem:[%s164] sm:$0x1] %v308
        %s326 = sshllo.u32 0, 4
        %v328 = vld [vmem:[#allocation2] sm:%s326]
        %s329 = sshllo.u32 0, 4
        %330 = vst [vmem:[%s139] sm:%s329] %v328
        %s332 = sshllo.u32 0, 2
        %v334 = vld [vmem:[#allocation4] sm:%s332]
        %s335 = sshllo.u32 0, 2
        %336 = vst [vmem:[%s146] sm:%s335] %v334
        %s338 = sshllo.u32 0, 2
        %v340 = vld [vmem:[#allocation7] sm:%s338]
        %s341 = sshllo.u32 0, 2
        %342 = vst [vmem:[%s152] sm:%s341] %v340
        %s343 = sand.u32 %s14, 1
        %s344 = sand.u32 %s14, 1
        %s345 = smul.addr %s344, 4
        %s346 = scalar_lea.vmem [#allocation3], %s345
        %s347 = sand.u32 %s24, 1
        %s348 = scalar_lea.sflag [#allocation6], %s347
        %s349 = sand.u32 %s24, 1
        %s350 = smul.addr %s349, 2
        %s351 = scalar_lea.vmem [#allocation5], %s350
        %s352 = sand.u32 %s52, 1
        %s353 = sand.u32 %s52, 1
        %s354 = smul.addr %s353, 2
        %s355 = scalar_lea.vmem [#allocation8], %s354
        %s356 = smul.addr %s14, 4
        %s357 = scalar_lea.vmem %s1, %s356
        // Predicated region
        $region59: #{custom-call.8} parent=49 // pred_check
          _
        $region60: #{custom-call.8} parent=49 // pred_check_branch
          %359 = sbr.rel (0) target = $region62
        $region61: #{custom-call.8} parent=49 // pred_region
          // Predicated region
          $region63: #{custom-call.8} parent=61 // pred_check
            _
          $region64: #{custom-call.8} parent=61 // pred_check_branch
            %361 = sbr.rel target = $region66
          $region65: #{custom-call.8} parent=61 // pred_region
            // Predicated region
            $region78: #{custom-call.8} parent=65 // pred_check
              _
            $region79: #{custom-call.8} parent=65 // pred_check_branch
              %376 = sbr.rel (0) target = $region81
            $region80: #{custom-call.8} parent=65 // pred_region
              loop: start=0, step=1, limit=1
              $region82: #{custom-call.8} parent=80 // loop_pre_header
                _
              $region83: #{custom-call.8} parent=80 // loop_header
                %s379 = sphi 0, %s383
                %p380 = scmp.ge.s32.totalorder %s379, 1
                %s384 = sphi %s346, %s346
                %s385 = sphi %s357, %s357
              $region84: #{custom-call.8} parent=80 // loop_header_branch
                %382 = sbr.rel (%p380) target = $region88
              $region85: #{custom-call.8} parent=80 // loop_body
                %v386 = vld [vmem:[%s384] sm:$0xf]
                %387 = vst [vmem:[%s385] sm:$0xf] %v386
              $region86: #{custom-call.8} parent=80 // loop_footer
                %s383 = sadd.s32 1, %s379
              $region87: #{custom-call.8} parent=80 // loop_footer_branch
                %378 = sbr.rel target = $region83
              $region88: #{custom-call.8} parent=80 // loop_exit
                _
            $region81: #{custom-call.8} parent=65 // pred_fallthru
              _
          $region66: #{custom-call.8} parent=61 // pred_fallthru
            _
          // Predicated region
          $region67: #{custom-call.8} parent=61 // pred_check
            _
          $region68: #{custom-call.8} parent=61 // pred_check_branch
            %363 = sbr.rel (0) target = $region70
          $region69: #{custom-call.8} parent=61 // pred_region
            loop: start=0, step=1, limit=1
            $region71: #{custom-call.8} parent=69 // loop_pre_header
              _
            $region72: #{custom-call.8} parent=69 // loop_header
              %s366 = sphi 0, %s370
              %p367 = scmp.ge.s32.totalorder %s366, 1
              %s371 = sphi %s346, %s346
              %s372 = sphi %s357, %s357
            $region73: #{custom-call.8} parent=69 // loop_header_branch
              %369 = sbr.rel (%p367) target = $region77
            $region74: #{custom-call.8} parent=69 // loop_body
              %v373 = vld [vmem:[%s371] sm:$0xf]
              %374 = vst [vmem:[%s372] sm:$0xf] %v373
            $region75: #{custom-call.8} parent=69 // loop_footer
              %s370 = sadd.s32 1, %s366
            $region76: #{custom-call.8} parent=69 // loop_footer_branch
              %365 = sbr.rel target = $region72
            $region77: #{custom-call.8} parent=69 // loop_exit
              _
          $region70: #{custom-call.8} parent=61 // pred_fallthru
            _
        $region62: #{custom-call.8} parent=49 // pred_fallthru
          _
        %388 = vnop
        // Predicated region
        $region89: #{custom-call.8} parent=49 // pred_check
          %p389 = pneg %p34
        $region90: #{custom-call.8} parent=49 // pred_check_branch
          %391 = sbr.rel (%p389) target = $region92
        $region91: #{custom-call.8} parent=49 // pred_region
          %s392 = sshrl.u32 %s14, 3
          %s394 = ssub.s32 32, 32
          %395 = vsyncadd %s348, %s394
          %s396 = smul.addr %s392, 32
          %s397 = scalar_lea.hbm %s2, %s396
          %s399 = sshll.u32 %s351, 4
          %s400 = int_to_ptr.vmem [resolvable:$true] %s399
          %402 = dma.vmem_to_hbm [thread:$0]  %s400, 32, %s397, %s348
        $region92: #{custom-call.8} parent=49 // pred_fallthru
          _
        // Predicated region
        $region93: #{custom-call.8} parent=49 // pred_check
          %p403 = pneg %p62
        $region94: #{custom-call.8} parent=49 // pred_check_branch
          %405 = sbr.rel (%p403) target = $region96
        $region95: #{custom-call.8} parent=49 // pred_region
          %s406 = sshrl.u32 %s14, 3
          %s407 = smul.addr %s406, 2
          %s408 = scalar_lea.vmem %s3, %s407
          // Predicated region
          $region97: #{custom-call.8} parent=95 // pred_check
            _
          $region98: #{custom-call.8} parent=95 // pred_check_branch
            %410 = sbr.rel (0) target = $region100
          $region99: #{custom-call.8} parent=95 // pred_region
            // Predicated region
            $region101: #{custom-call.8} parent=99 // pred_check
              _
            $region102: #{custom-call.8} parent=99 // pred_check_branch
              %412 = sbr.rel target = $region104
            $region103: #{custom-call.8} parent=99 // pred_region
              // Predicated region
              $region116: #{custom-call.8} parent=103 // pred_check
                _
              $region117: #{custom-call.8} parent=103 // pred_check_branch
                %427 = sbr.rel (0) target = $region119
              $region118: #{custom-call.8} parent=103 // pred_region
                loop: start=0, step=1, limit=1
                $region120: #{custom-call.8} parent=118 // loop_pre_header
                  _
                $region121: #{custom-call.8} parent=118 // loop_header
                  %s430 = sphi 0, %s434
                  %p431 = scmp.ge.s32.totalorder %s430, 1
                  %s435 = sphi %s355, %s355
                  %s436 = sphi %s408, %s408
                $region122: #{custom-call.8} parent=118 // loop_header_branch
                  %433 = sbr.rel (%p431) target = $region126
                $region123: #{custom-call.8} parent=118 // loop_body
                  %v437 = vld [vmem:[%s435] sm:$0x3]
                  %438 = vst [vmem:[%s436] sm:$0x3] %v437
                $region124: #{custom-call.8} parent=118 // loop_footer
                  %s434 = sadd.s32 1, %s430
                $region125: #{custom-call.8} parent=118 // loop_footer_branch
                  %429 = sbr.rel target = $region121
                $region126: #{custom-call.8} parent=118 // loop_exit
                  _
              $region119: #{custom-call.8} parent=103 // pred_fallthru
                _
            $region104: #{custom-call.8} parent=99 // pred_fallthru
              _
            // Predicated region
            $region105: #{custom-call.8} parent=99 // pred_check
              _
            $region106: #{custom-call.8} parent=99 // pred_check_branch
              %414 = sbr.rel (0) target = $region108
            $region107: #{custom-call.8} parent=99 // pred_region
              loop: start=0, step=1, limit=1
              $region109: #{custom-call.8} parent=107 // loop_pre_header
                _
              $region110: #{custom-call.8} parent=107 // loop_header
                %s417 = sphi 0, %s421
                %p418 = scmp.ge.s32.totalorder %s417, 1
                %s422 = sphi %s355, %s355
                %s423 = sphi %s408, %s408
              $region111: #{custom-call.8} parent=107 // loop_header_branch
                %420 = sbr.rel (%p418) target = $region115
              $region112: #{custom-call.8} parent=107 // loop_body
                %v424 = vld [vmem:[%s422] sm:$0x3]
                %425 = vst [vmem:[%s423] sm:$0x3] %v424
              $region113: #{custom-call.8} parent=107 // loop_footer
                %s421 = sadd.s32 1, %s417
              $region114: #{custom-call.8} parent=107 // loop_footer_branch
                %416 = sbr.rel target = $region110
              $region115: #{custom-call.8} parent=107 // loop_exit
                _
            $region108: #{custom-call.8} parent=99 // pred_fallthru
              _
          $region100: #{custom-call.8} parent=95 // pred_fallthru
            _
          %439 = vnop
        $region96: #{custom-call.8} parent=49 // pred_fallthru
          _
      $region50: #{custom-call.8} parent=5 // pred_fallthru
        _
      %p440 = scmp.le.s32.totalorder 2, %s9
      // Predicated region
      $region127: #{custom-call.8} parent=5 // pred_check
        %p441 = pneg %p440
      $region128: #{custom-call.8} parent=5 // pred_check_branch
        %443 = sbr.rel (%p441) target = $region130
      $region129: #{custom-call.8} parent=5 // pred_region
        %s444 = ssub.s32 %s9, 2
        %s445 = sand.u32 %s15, 1
        %s446 = sand.u32 %s15, 1
        %s447 = smul.addr %s446, 4
        %s448 = scalar_lea.vmem [#allocation3], %s447
        // Predicated region
        $region131: #{custom-call.8} parent=129 // pred_check
          %p449 = pneg %p40
        $region132: #{custom-call.8} parent=129 // pred_check_branch
          %451 = sbr.rel (%p449) target = $region134
        $region133: #{custom-call.8} parent=129 // pred_region
          %s452 = sand.u32 %s25, 1
          %s453 = scalar_lea.sflag [#allocation6], %s452
          %s454 = sand.u32 %s25, 1
          %s455 = smul.addr %s454, 2
          %s456 = scalar_lea.vmem [#allocation5], %s455
          %457 = dma.done %s453, 32
        $region134: #{custom-call.8} parent=129 // pred_fallthru
          _
        // Predicated region
        $region135: #{custom-call.8} parent=129 // pred_check
          %p458 = pneg %p68
        $region136: #{custom-call.8} parent=129 // pred_check_branch
          %460 = sbr.rel (%p458) target = $region138
        $region137: #{custom-call.8} parent=129 // pred_region
          %s461 = sand.u32 %s53, 1
          %s462 = sand.u32 %s53, 1
          %s463 = smul.addr %s462, 2
          %s464 = scalar_lea.vmem [#allocation8], %s463
        $region138: #{custom-call.8} parent=129 // pred_fallthru
          _
      $region130: #{custom-call.8} parent=5 // pred_fallthru
        _
    $region6: #{custom-call.8} parent=1 // loop_footer
      %s13 = sadd.s32 1, %s9
    $region7: #{custom-call.8} parent=1 // loop_footer_branch
      %8 = sbr.rel target = $region3
    $region8: #{custom-call.8} parent=1 // loop_exit
      _
    %465 = vsyncpa [#allocation6], 1
    %s466 = scalar_lea.sflag [#allocation6], 1
    %467 = vsyncpa %s466, 1

// kernel: custom-call.9
$region0: #{custom-call.9}
  %s0 = inlined_call_operand.vmem [shape: f32[2,1,4,4], index: 0, kind: input, shape index: {}]
  %s1 = inlined_call_operand.vmem [shape: f32[2,1,4,4], index: 1, kind: output, shape index: {}]
  $region1: #{custom-call.9} parent=0
    #allocation0 [shape = 'u8[4096]{0}', space=vmem, size = 0x1000, scoped, tag = 'operand span for operand 0']
    #allocation1 [shape = 'u8[4096]{0}', space=vmem, size = 0x1000, scoped, tag = 'packed  for operand 0']
    #allocation2 [shape = 'u8[4096]{0}', space=vmem, size = 0x1000, scoped, tag = 'operand span for operand 1']
    #allocation3 [shape = 'u8[4096]{0}', space=vmem, size = 0x1000, scoped, tag = 'packed  for operand 1']
    loop: start=0, step=1, limit=4
    $region2: #{custom-call.9} parent=1 // loop_pre_header
      _
    $region3: #{custom-call.9} parent=1 // loop_header
      %s3 = sphi 0, %s7
      %p4 = scmp.ge.s32.totalorder %s3, 4
      %s10 = sphi 0, %s36
      %s11 = sphi 0, %s32
      %s12 = sphi 0, %s28
      %s13 = sphi 0, %s24
      %s14 = sphi 0, %s10
      %s15 = sphi 0, %s11
      %s16 = sphi 0, %s12
      %s17 = sphi 0, %s13
      %s18 = sphi 0, %s14
      %s19 = sphi 0, %s15
      %s20 = sphi 0, %s16
      %s21 = sphi 0, %s17
    $region4: #{custom-call.9} parent=1 // loop_header_branch
      %6 = sbr.rel (%p4) target = $region8
    $region5: #{custom-call.9} parent=1 // loop_body
      %s8 = ssub.s32 %s3, 1
      %s9 = ssub.s32 %s3, 2
      %s22 = sadd.s32 1, %s13
      %p23 = scmp.ge.s32.totalorder %s22, 1
      %s24 = scalar_select %p23, 0, %s22
      %s25 = sadd.s32 1, %s12
      %s26 = scalar_select %p23, %s25, %s12
      %p27 = scmp.ge.s32.totalorder %s26, 1
      %s28 = scalar_select %p27, 0, %s26
      %s29 = sadd.s32 1, %s11
      %s30 = scalar_select %p27, %s29, %s11
      %p31 = scmp.ge.s32.totalorder %s30, 1
      %s32 = scalar_select %p31, 0, %s30
      %s33 = sadd.s32 1, %s10
      %s34 = scalar_select %p31, %s33, %s10
      %p35 = scmp.ge.s32.totalorder %s34, 2
      %s36 = scalar_select %p35, 0, %s34
      %p37 = scmp.le.s32.totalorder 1, %s3
      %p38 = scmp.lt.s32.totalorder %s3, 3
      %p39 = pnand %p37, %p38
      %p40 = pneg %p39
      // Predicated region
      $region9: #{custom-call.9} parent=5 // pred_check
        _
      $region10: #{custom-call.9} parent=5 // pred_check_branch
        %42 = sbr.rel (%p39) target = $region12
      $region11: #{custom-call.9} parent=5 // pred_region
        %s43 = ssub.s32 %s3, 1
      $region12: #{custom-call.9} parent=5 // pred_fallthru
        _
      %p44 = scmp.lt.s32.totalorder %s3, 2
      // Predicated region
      $region13: #{custom-call.9} parent=5 // pred_check
        %p45 = pneg %p44
      $region14: #{custom-call.9} parent=5 // pred_check_branch
        %47 = sbr.rel (%p45) target = $region16
      $region15: #{custom-call.9} parent=5 // pred_region
        %s48 = sand.u32 %s3, 1
        %s49 = sand.u32 %s3, 1
        %s50 = smul.addr %s49, 4
        %s51 = scalar_lea.vmem [#allocation1], %s50
        %s52 = sadd.s32 %s13, %s12
        %s53 = sadd.s32 %s52, %s11
        %s54 = sadd.s32 %s53, %s10
        %s55 = smul.addr %s54, 4
        %s56 = scalar_lea.vmem %s0, %s55
        // Predicated region
        $region17: #{custom-call.9} parent=15 // pred_check
          _
        $region18: #{custom-call.9} parent=15 // pred_check_branch
          %58 = sbr.rel (0) target = $region20
        $region19: #{custom-call.9} parent=15 // pred_region
          // Predicated region
          $region21: #{custom-call.9} parent=19 // pred_check
            _
          $region22: #{custom-call.9} parent=19 // pred_check_branch
            %60 = sbr.rel target = $region24
          $region23: #{custom-call.9} parent=19 // pred_region
            // Predicated region
            $region36: #{custom-call.9} parent=23 // pred_check
              _
            $region37: #{custom-call.9} parent=23 // pred_check_branch
              %75 = sbr.rel (0) target = $region39
            $region38: #{custom-call.9} parent=23 // pred_region
              loop: start=0, step=1, limit=1
              $region40: #{custom-call.9} parent=38 // loop_pre_header
                _
              $region41: #{custom-call.9} parent=38 // loop_header
                %s78 = sphi 0, %s82
                %p79 = scmp.ge.s32.totalorder %s78, 1
                %s83 = sphi %s56, %s56
                %s84 = sphi %s51, %s51
              $region42: #{custom-call.9} parent=38 // loop_header_branch
                %81 = sbr.rel (%p79) target = $region46
              $region43: #{custom-call.9} parent=38 // loop_body
                %v85 = vld [vmem:[%s83] sm:$0xf]
                %86 = vst [vmem:[%s84] sm:$0xf] %v85
              $region44: #{custom-call.9} parent=38 // loop_footer
                %s82 = sadd.s32 1, %s78
              $region45: #{custom-call.9} parent=38 // loop_footer_branch
                %77 = sbr.rel target = $region41
              $region46: #{custom-call.9} parent=38 // loop_exit
                _
            $region39: #{custom-call.9} parent=23 // pred_fallthru
              _
          $region24: #{custom-call.9} parent=19 // pred_fallthru
            _
          // Predicated region
          $region25: #{custom-call.9} parent=19 // pred_check
            _
          $region26: #{custom-call.9} parent=19 // pred_check_branch
            %62 = sbr.rel (0) target = $region28
          $region27: #{custom-call.9} parent=19 // pred_region
            loop: start=0, step=1, limit=1
            $region29: #{custom-call.9} parent=27 // loop_pre_header
              _
            $region30: #{custom-call.9} parent=27 // loop_header
              %s65 = sphi 0, %s69
              %p66 = scmp.ge.s32.totalorder %s65, 1
              %s70 = sphi %s56, %s56
              %s71 = sphi %s51, %s51
            $region31: #{custom-call.9} parent=27 // loop_header_branch
              %68 = sbr.rel (%p66) target = $region35
            $region32: #{custom-call.9} parent=27 // loop_body
              %v72 = vld [vmem:[%s70] sm:$0xf]
              %73 = vst [vmem:[%s71] sm:$0xf] %v72
            $region33: #{custom-call.9} parent=27 // loop_footer
              %s69 = sadd.s32 1, %s65
            $region34: #{custom-call.9} parent=27 // loop_footer_branch
              %64 = sbr.rel target = $region30
            $region35: #{custom-call.9} parent=27 // loop_exit
              _
          $region28: #{custom-call.9} parent=19 // pred_fallthru
            _
        $region20: #{custom-call.9} parent=15 // pred_fallthru
          _
        %87 = vnop
      $region16: #{custom-call.9} parent=5 // pred_fallthru
        _
      %p88 = scmp.le.s32.totalorder 1, %s3
      %p89 = scmp.lt.s32.totalorder %s3, 3
      %p90 = pnand %p88, %p89
      %p91 = pneg %p90
      // Predicated region
      $region47: #{custom-call.9} parent=5 // pred_check
        _
      $region48: #{custom-call.9} parent=5 // pred_check_branch
        %93 = sbr.rel (%p90) target = $region50
      $region49: #{custom-call.9} parent=5 // pred_region
        #allocation4 [shape = 'f32[4,4]{1,0}', space=vmem, size = 0x1000, scoped, tag = 'rescaled input a']
        %s94 = ssub.s32 %s3, 1
        %s95 = sand.u32 %s8, 1
        %s96 = sand.u32 %s8, 1
        %s97 = smul.addr %s96, 4
        %s98 = scalar_lea.vmem [#allocation1], %s97
        %s99 = sand.u32 %s8, 1
        %s100 = sand.u32 %s8, 1
        %s101 = smul.addr %s100, 4
        %s102 = scalar_lea.vmem [#allocation1], %s101
        %s103 = sand.u32 %s8, 1
        %s104 = sand.u32 %s8, 1
        %s105 = smul.addr %s104, 4
        %s106 = scalar_lea.vmem [#allocation3], %s105
        %s108 = sshllo.u32 0, 4
        %v109 = vld [vmem:[%s102] sm:%s108]
        %110 = vst [vmem:[#allocation0] sm:%s108] %v109
        %v111 = vlaneseq
        %v112 = vand.u32 %v111, 127
        %vm113 = vcmp.lt.s32.totalorder %v112, 4
        %v114 = vlaneseq
        %v115 = vshrl.u32 %v114, 7
        %vm117 = vcmp.eq.s32.totalorder %v115, %v112
        %v118 = vld [vmem:[#allocation0] sm:$0xff]
        %v119 = vsel %vm117, %v118, 0.0
        %120 = vadd.xlane.f32.xlu0 %v119
        %v121 = vpop.xlane.xlu0 %120
        %vm122 = vcmp.le.s32.totalorder %v115, %v112
        %vm123 = vmand %vm122, %vm113
        %v124 = vsel %vm123, %v118, 0.0
        %v125 = vrcp.pop %v121
        %v126 = vmul.f32 %v124, %v125
        %127 = vst [vmem:[#allocation4] sm:$0xff] %v126
        %v128 = vlaneseq
        %v129 = vand.u32 %v128, 127
        %v130 = vlaneseq
        %v131 = vshrl.u32 %v130, 7
        %vm133 = vcmp.eq.s32.totalorder %v129, %v131
        %v134 = vlaneseq
        %v135 = vand.u32 %v134, 127
        %vm136 = vcmp.eq.s32.totalorder %v135, 3
        %v137 = vsel %vm136, 1.0, -1.0
        %v138 = vsel %vm133, %v137, 0.0
        %s139 = scalar_lea.vmem [#allocation4], 2
        %v140 = vld [vmem:[%s139] ss:$0 sm:$0xff]
        %v141 = vxor.u32 %v140, 2147483648
        %v142 = vlaneseq
        %v143 = vand.u32 %v142, 127
        %vm144 = vcmp.eq.s32.totalorder %v143, 2
        %v145 = vmul.f32 %v141, %v138
        %146 = vadd.xlane.f32.xlu0 %v145
        %v147 = vpop.xlane.xlu0 %146
        %v148 = vsel %vm144, %v147, %v138
        %s149 = scalar_lea.vmem [#allocation4], 1
        %v150 = vld [vmem:[%s149] ss:$0 sm:$0xff]
        %v151 = vxor.u32 %v150, 2147483648
        %v152 = vlaneseq
        %v153 = vand.u32 %v152, 127
        %vm154 = vcmp.eq.s32.totalorder %v153, 1
        %v155 = vmul.f32 %v151, %v148
        %156 = vadd.xlane.f32.xlu0 %v155
        %v157 = vpop.xlane.xlu0 %156
        %v158 = vsel %vm154, %v157, %v148
        %v159 = vld [vmem:[#allocation4] ss:$0 sm:$0xff]
        %v160 = vxor.u32 %v159, 2147483648
        %v161 = vlaneseq
        %v162 = vand.u32 %v161, 127
        %vm163 = vcmp.eq.s32.totalorder %v162, 0
        %v164 = vmul.f32 %v160, %v158
        %165 = vadd.xlane.f32.xlu0 %v164
        %v166 = vpop.xlane.xlu0 %165
        %v167 = vsel %vm163, %v166, %v158
        %v168 = vrcp.pop %v121
        %v169 = vmul.f32 %v167, %v168
        %vm170 = vweird.f32 %v121
        %v171 = vsel %vm170, %v167, %v169
        %172 = vst [vmem:[#allocation2] sm:$0xff] %v171
        %s174 = sshllo.u32 0, 4
        %v176 = vld [vmem:[#allocation2] sm:%s174]
        %s177 = sshllo.u32 0, 4
        %178 = vst [vmem:[%s106] sm:%s177] %v176
        %s179 = sand.u32 %s8, 1
        %s180 = sand.u32 %s8, 1
        %s181 = smul.addr %s180, 4
        %s182 = scalar_lea.vmem [#allocation3], %s181
        %s183 = sadd.s32 %s17, %s16
        %s184 = sadd.s32 %s183, %s15
        %s185 = sadd.s32 %s184, %s14
        %s186 = smul.addr %s185, 4
        %s187 = scalar_lea.vmem %s1, %s186
        // Predicated region
        $region51: #{custom-call.9} parent=49 // pred_check
          _
        $region52: #{custom-call.9} parent=49 // pred_check_branch
          %189 = sbr.rel (0) target = $region54
        $region53: #{custom-call.9} parent=49 // pred_region
          // Predicated region
          $region55: #{custom-call.9} parent=53 // pred_check
            _
          $region56: #{custom-call.9} parent=53 // pred_check_branch
            %191 = sbr.rel target = $region58
          $region57: #{custom-call.9} parent=53 // pred_region
            // Predicated region
            $region70: #{custom-call.9} parent=57 // pred_check
              _
            $region71: #{custom-call.9} parent=57 // pred_check_branch
              %206 = sbr.rel (0) target = $region73
            $region72: #{custom-call.9} parent=57 // pred_region
              loop: start=0, step=1, limit=1
              $region74: #{custom-call.9} parent=72 // loop_pre_header
                _
              $region75: #{custom-call.9} parent=72 // loop_header
                %s209 = sphi 0, %s213
                %p210 = scmp.ge.s32.totalorder %s209, 1
                %s214 = sphi %s182, %s182
                %s215 = sphi %s187, %s187
              $region76: #{custom-call.9} parent=72 // loop_header_branch
                %212 = sbr.rel (%p210) target = $region80
              $region77: #{custom-call.9} parent=72 // loop_body
                %v216 = vld [vmem:[%s214] sm:$0xf]
                %217 = vst [vmem:[%s215] sm:$0xf] %v216
              $region78: #{custom-call.9} parent=72 // loop_footer
                %s213 = sadd.s32 1, %s209
              $region79: #{custom-call.9} parent=72 // loop_footer_branch
                %208 = sbr.rel target = $region75
              $region80: #{custom-call.9} parent=72 // loop_exit
                _
            $region73: #{custom-call.9} parent=57 // pred_fallthru
              _
          $region58: #{custom-call.9} parent=53 // pred_fallthru
            _
          // Predicated region
          $region59: #{custom-call.9} parent=53 // pred_check
            _
          $region60: #{custom-call.9} parent=53 // pred_check_branch
            %193 = sbr.rel (0) target = $region62
          $region61: #{custom-call.9} parent=53 // pred_region
            loop: start=0, step=1, limit=1
            $region63: #{custom-call.9} parent=61 // loop_pre_header
              _
            $region64: #{custom-call.9} parent=61 // loop_header
              %s196 = sphi 0, %s200
              %p197 = scmp.ge.s32.totalorder %s196, 1
              %s201 = sphi %s182, %s182
              %s202 = sphi %s187, %s187
            $region65: #{custom-call.9} parent=61 // loop_header_branch
              %199 = sbr.rel (%p197) target = $region69
            $region66: #{custom-call.9} parent=61 // loop_body
              %v203 = vld [vmem:[%s201] sm:$0xf]
              %204 = vst [vmem:[%s202] sm:$0xf] %v203
            $region67: #{custom-call.9} parent=61 // loop_footer
              %s200 = sadd.s32 1, %s196
            $region68: #{custom-call.9} parent=61 // loop_footer_branch
              %195 = sbr.rel target = $region64
            $region69: #{custom-call.9} parent=61 // loop_exit
              _
          $region62: #{custom-call.9} parent=53 // pred_fallthru
            _
        $region54: #{custom-call.9} parent=49 // pred_fallthru
          _
        %218 = vnop
      $region50: #{custom-call.9} parent=5 // pred_fallthru
        _
      %p219 = scmp.le.s32.totalorder 2, %s3
      // Predicated region
      $region81: #{custom-call.9} parent=5 // pred_check
        %p220 = pneg %p219
      $region82: #{custom-call.9} parent=5 // pred_check_branch
        %222 = sbr.rel (%p220) target = $region84
      $region83: #{custom-call.9} parent=5 // pred_region
        %s223 = ssub.s32 %s3, 2
        %s224 = sand.u32 %s9, 1
        %s225 = sand.u32 %s9, 1
        %s226 = smul.addr %s225, 4
        %s227 = scalar_lea.vmem [#allocation3], %s226
      $region84: #{custom-call.9} parent=5 // pred_fallthru
        _
    $region6: #{custom-call.9} parent=1 // loop_footer
      %s7 = sadd.s32 1, %s3
    $region7: #{custom-call.9} parent=1 // loop_footer_branch
      %2 = sbr.rel target = $region3
    $region8: #{custom-call.9} parent=1 // loop_exit
      _

// kernel: custom-call.10
$region0: #{custom-call.10}
  %s0 = inlined_call_operand.vmem [shape: f32[2,1,4,4], index: 0, kind: input, shape index: {}]
  %s1 = inlined_call_operand.vmem [shape: f32[2,1,4,4], index: 1, kind: output, shape index: {}]
  $region1: #{custom-call.10} parent=0
    #allocation0 [shape = 'u8[4096]{0}', space=vmem, size = 0x1000, scoped, tag = 'operand span for operand 0']
    #allocation1 [shape = 'u8[4096]{0}', space=vmem, size = 0x1000, scoped, tag = 'packed  for operand 0']
    #allocation2 [shape = 'u8[4096]{0}', space=vmem, size = 0x1000, scoped, tag = 'operand span for operand 1']
    #allocation3 [shape = 'u8[4096]{0}', space=vmem, size = 0x1000, scoped, tag = 'packed  for operand 1']
    loop: start=0, step=1, limit=4
    $region2: #{custom-call.10} parent=1 // loop_pre_header
      _
    $region3: #{custom-call.10} parent=1 // loop_header
      %s3 = sphi 0, %s7
      %p4 = scmp.ge.s32.totalorder %s3, 4
      %s10 = sphi 0, %s36
      %s11 = sphi 0, %s32
      %s12 = sphi 0, %s28
      %s13 = sphi 0, %s24
      %s14 = sphi 0, %s10
      %s15 = sphi 0, %s11
      %s16 = sphi 0, %s12
      %s17 = sphi 0, %s13
      %s18 = sphi 0, %s14
      %s19 = sphi 0, %s15
      %s20 = sphi 0, %s16
      %s21 = sphi 0, %s17
    $region4: #{custom-call.10} parent=1 // loop_header_branch
      %6 = sbr.rel (%p4) target = $region8
    $region5: #{custom-call.10} parent=1 // loop_body
      %s8 = ssub.s32 %s3, 1
      %s9 = ssub.s32 %s3, 2
      %s22 = sadd.s32 1, %s13
      %p23 = scmp.ge.s32.totalorder %s22, 1
      %s24 = scalar_select %p23, 0, %s22
      %s25 = sadd.s32 1, %s12
      %s26 = scalar_select %p23, %s25, %s12
      %p27 = scmp.ge.s32.totalorder %s26, 1
      %s28 = scalar_select %p27, 0, %s26
      %s29 = sadd.s32 1, %s11
      %s30 = scalar_select %p27, %s29, %s11
      %p31 = scmp.ge.s32.totalorder %s30, 1
      %s32 = scalar_select %p31, 0, %s30
      %s33 = sadd.s32 1, %s10
      %s34 = scalar_select %p31, %s33, %s10
      %p35 = scmp.ge.s32.totalorder %s34, 2
      %s36 = scalar_select %p35, 0, %s34
      %p37 = scmp.le.s32.totalorder 1, %s3
      %p38 = scmp.lt.s32.totalorder %s3, 3
      %p39 = pnand %p37, %p38
      %p40 = pneg %p39
      // Predicated region
      $region9: #{custom-call.10} parent=5 // pred_check
        _
      $region10: #{custom-call.10} parent=5 // pred_check_branch
        %42 = sbr.rel (%p39) target = $region12
      $region11: #{custom-call.10} parent=5 // pred_region
        %s43 = ssub.s32 %s3, 1
      $region12: #{custom-call.10} parent=5 // pred_fallthru
        _
      %p44 = scmp.lt.s32.totalorder %s3, 2
      // Predicated region
      $region13: #{custom-call.10} parent=5 // pred_check
        %p45 = pneg %p44
      $region14: #{custom-call.10} parent=5 // pred_check_branch
        %47 = sbr.rel (%p45) target = $region16
      $region15: #{custom-call.10} parent=5 // pred_region
        %s48 = sand.u32 %s3, 1
        %s49 = sand.u32 %s3, 1
        %s50 = smul.addr %s49, 4
        %s51 = scalar_lea.vmem [#allocation1], %s50
        %s52 = sadd.s32 %s13, %s12
        %s53 = sadd.s32 %s52, %s11
        %s54 = sadd.s32 %s53, %s10
        %s55 = smul.addr %s54, 4
        %s56 = scalar_lea.vmem %s0, %s55
        // Predicated region
        $region17: #{custom-call.10} parent=15 // pred_check
          _
        $region18: #{custom-call.10} parent=15 // pred_check_branch
          %58 = sbr.rel (0) target = $region20
        $region19: #{custom-call.10} parent=15 // pred_region
          // Predicated region
          $region21: #{custom-call.10} parent=19 // pred_check
            _
          $region22: #{custom-call.10} parent=19 // pred_check_branch
            %60 = sbr.rel target = $region24
          $region23: #{custom-call.10} parent=19 // pred_region
            // Predicated region
            $region36: #{custom-call.10} parent=23 // pred_check
              _
            $region37: #{custom-call.10} parent=23 // pred_check_branch
              %75 = sbr.rel (0) target = $region39
            $region38: #{custom-call.10} parent=23 // pred_region
              loop: start=0, step=1, limit=1
              $region40: #{custom-call.10} parent=38 // loop_pre_header
                _
              $region41: #{custom-call.10} parent=38 // loop_header
                %s78 = sphi 0, %s82
                %p79 = scmp.ge.s32.totalorder %s78, 1
                %s83 = sphi %s56, %s56
                %s84 = sphi %s51, %s51
              $region42: #{custom-call.10} parent=38 // loop_header_branch
                %81 = sbr.rel (%p79) target = $region46
              $region43: #{custom-call.10} parent=38 // loop_body
                %v85 = vld [vmem:[%s83] sm:$0xf]
                %86 = vst [vmem:[%s84] sm:$0xf] %v85
              $region44: #{custom-call.10} parent=38 // loop_footer
                %s82 = sadd.s32 1, %s78
              $region45: #{custom-call.10} parent=38 // loop_footer_branch
                %77 = sbr.rel target = $region41
              $region46: #{custom-call.10} parent=38 // loop_exit
                _
            $region39: #{custom-call.10} parent=23 // pred_fallthru
              _
          $region24: #{custom-call.10} parent=19 // pred_fallthru
            _
          // Predicated region
          $region25: #{custom-call.10} parent=19 // pred_check
            _
          $region26: #{custom-call.10} parent=19 // pred_check_branch
            %62 = sbr.rel (0) target = $region28
          $region27: #{custom-call.10} parent=19 // pred_region
            loop: start=0, step=1, limit=1
            $region29: #{custom-call.10} parent=27 // loop_pre_header
              _
            $region30: #{custom-call.10} parent=27 // loop_header
              %s65 = sphi 0, %s69
              %p66 = scmp.ge.s32.totalorder %s65, 1
              %s70 = sphi %s56, %s56
              %s71 = sphi %s51, %s51
            $region31: #{custom-call.10} parent=27 // loop_header_branch
              %68 = sbr.rel (%p66) target = $region35
            $region32: #{custom-call.10} parent=27 // loop_body
              %v72 = vld [vmem:[%s70] sm:$0xf]
              %73 = vst [vmem:[%s71] sm:$0xf] %v72
            $region33: #{custom-call.10} parent=27 // loop_footer
              %s69 = sadd.s32 1, %s65
            $region34: #{custom-call.10} parent=27 // loop_footer_branch
              %64 = sbr.rel target = $region30
            $region35: #{custom-call.10} parent=27 // loop_exit
              _
          $region28: #{custom-call.10} parent=19 // pred_fallthru
            _
        $region20: #{custom-call.10} parent=15 // pred_fallthru
          _
        %87 = vnop
      $region16: #{custom-call.10} parent=5 // pred_fallthru
        _
      %p88 = scmp.le.s32.totalorder 1, %s3
      %p89 = scmp.lt.s32.totalorder %s3, 3
      %p90 = pnand %p88, %p89
      %p91 = pneg %p90
      // Predicated region
      $region47: #{custom-call.10} parent=5 // pred_check
        _
      $region48: #{custom-call.10} parent=5 // pred_check_branch
        %93 = sbr.rel (%p90) target = $region50
      $region49: #{custom-call.10} parent=5 // pred_region
        #allocation4 [shape = 'f32[4,4]{1,0}', space=vmem, size = 0x1000, scoped, tag = 'rescaled input a']
        %s94 = ssub.s32 %s3, 1
        %s95 = sand.u32 %s8, 1
        %s96 = sand.u32 %s8, 1
        %s97 = smul.addr %s96, 4
        %s98 = scalar_lea.vmem [#allocation1], %s97
        %s99 = sand.u32 %s8, 1
        %s100 = sand.u32 %s8, 1
        %s101 = smul.addr %s100, 4
        %s102 = scalar_lea.vmem [#allocation1], %s101
        %s103 = sand.u32 %s8, 1
        %s104 = sand.u32 %s8, 1
        %s105 = smul.addr %s104, 4
        %s106 = scalar_lea.vmem [#allocation3], %s105
        %s108 = sshllo.u32 0, 4
        %v109 = vld [vmem:[%s102] sm:%s108]
        %110 = vst [vmem:[#allocation0] sm:%s108] %v109
        %v111 = vlaneseq
        %v112 = vand.u32 %v111, 127
        %vm113 = vcmp.lt.s32.totalorder %v112, 4
        %v114 = vlaneseq
        %v115 = vshrl.u32 %v114, 7
        %vm117 = vcmp.eq.s32.totalorder %v115, %v112
        %v118 = vld [vmem:[#allocation0] sm:$0xff]
        %v119 = vsel %vm117, %v118, 0.0
        %120 = vadd.xlane.f32.xlu0 %v119
        %v121 = vpop.xlane.xlu0 %120
        %vm122 = vcmp.ge.s32.totalorder %v115, %v112
        %vm123 = vmand %vm122, %vm113
        %v124 = vsel %vm123, %v118, 0.0
        %v125 = vrcp.pop %v121
        %v126 = vmul.f32 %v124, %v125
        %127 = vst [vmem:[#allocation4] sm:$0xff] %v126
        %v128 = vlaneseq
        %v129 = vand.u32 %v128, 127
        %v130 = vlaneseq
        %v131 = vshrl.u32 %v130, 7
        %vm133 = vcmp.eq.s32.totalorder %v129, %v131
        %v134 = vlaneseq
        %v135 = vand.u32 %v134, 127
        %vm136 = vcmp.eq.s32.totalorder %v135, 0
        %v137 = vsel %vm136, 1.0, -1.0
        %v138 = vsel %vm133, %v137, 0.0
        %s139 = scalar_lea.vmem [#allocation4], 1
        %v140 = vld [vmem:[%s139] ss:$0 sm:$0xff]
        %v141 = vxor.u32 %v140, 2147483648
        %v142 = vlaneseq
        %v143 = vand.u32 %v142, 127
        %vm144 = vcmp.eq.s32.totalorder %v143, 1
        %v145 = vmul.f32 %v141, %v138
        %146 = vadd.xlane.f32.xlu0 %v145
        %v147 = vpop.xlane.xlu0 %146
        %v148 = vsel %vm144, %v147, %v138
        %s149 = scalar_lea.vmem [#allocation4], 2
        %v150 = vld [vmem:[%s149] ss:$0 sm:$0xff]
        %v151 = vxor.u32 %v150, 2147483648
        %v152 = vlaneseq
        %v153 = vand.u32 %v152, 127
        %vm154 = vcmp.eq.s32.totalorder %v153, 2
        %v155 = vmul.f32 %v151, %v148
        %156 = vadd.xlane.f32.xlu0 %v155
        %v157 = vpop.xlane.xlu0 %156
        %v158 = vsel %vm154, %v157, %v148
        %s159 = scalar_lea.vmem [#allocation4], 3
        %v160 = vld [vmem:[%s159] ss:$0 sm:$0xff]
        %v161 = vxor.u32 %v160, 2147483648
        %v162 = vlaneseq
        %v163 = vand.u32 %v162, 127
        %vm164 = vcmp.eq.s32.totalorder %v163, 3
        %v165 = vmul.f32 %v161, %v158
        %166 = vadd.xlane.f32.xlu0 %v165
        %v167 = vpop.xlane.xlu0 %166
        %v168 = vsel %vm164, %v167, %v158
        %v169 = vrcp.pop %v121
        %v170 = vmul.f32 %v168, %v169
        %vm171 = vweird.f32 %v121
        %v172 = vsel %vm171, %v168, %v170
        %173 = vst [vmem:[#allocation2] sm:$0xff] %v172
        %s175 = sshllo.u32 0, 4
        %v177 = vld [vmem:[#allocation2] sm:%s175]
        %s178 = sshllo.u32 0, 4
        %179 = vst [vmem:[%s106] sm:%s178] %v177
        %s180 = sand.u32 %s8, 1
        %s181 = sand.u32 %s8, 1
        %s182 = smul.addr %s181, 4
        %s183 = scalar_lea.vmem [#allocation3], %s182
        %s184 = sadd.s32 %s17, %s16
        %s185 = sadd.s32 %s184, %s15
        %s186 = sadd.s32 %s185, %s14
        %s187 = smul.addr %s186, 4
        %s188 = scalar_lea.vmem %s1, %s187
        // Predicated region
        $region51: #{custom-call.10} parent=49 // pred_check
          _
        $region52: #{custom-call.10} parent=49 // pred_check_branch
          %190 = sbr.rel (0) target = $region54
        $region53: #{custom-call.10} parent=49 // pred_region
          // Predicated region
          $region55: #{custom-call.10} parent=53 // pred_check
            _
          $region56: #{custom-call.10} parent=53 // pred_check_branch
            %192 = sbr.rel target = $region58
          $region57: #{custom-call.10} parent=53 // pred_region
            // Predicated region
            $region70: #{custom-call.10} parent=57 // pred_check
              _
            $region71: #{custom-call.10} parent=57 // pred_check_branch
              %207 = sbr.rel (0) target = $region73
            $region72: #{custom-call.10} parent=57 // pred_region
              loop: start=0, step=1, limit=1
              $region74: #{custom-call.10} parent=72 // loop_pre_header
                _
              $region75: #{custom-call.10} parent=72 // loop_header
                %s210 = sphi 0, %s214
                %p211 = scmp.ge.s32.totalorder %s210, 1
                %s215 = sphi %s183, %s183
                %s216 = sphi %s188, %s188
              $region76: #{custom-call.10} parent=72 // loop_header_branch
                %213 = sbr.rel (%p211) target = $region80
              $region77: #{custom-call.10} parent=72 // loop_body
                %v217 = vld [vmem:[%s215] sm:$0xf]
                %218 = vst [vmem:[%s216] sm:$0xf] %v217
              $region78: #{custom-call.10} parent=72 // loop_footer
                %s214 = sadd.s32 1, %s210
              $region79: #{custom-call.10} parent=72 // loop_footer_branch
                %209 = sbr.rel target = $region75
              $region80: #{custom-call.10} parent=72 // loop_exit
                _
            $region73: #{custom-call.10} parent=57 // pred_fallthru
              _
          $region58: #{custom-call.10} parent=53 // pred_fallthru
            _
          // Predicated region
          $region59: #{custom-call.10} parent=53 // pred_check
            _
          $region60: #{custom-call.10} parent=53 // pred_check_branch
            %194 = sbr.rel (0) target = $region62
          $region61: #{custom-call.10} parent=53 // pred_region
            loop: start=0, step=1, limit=1
            $region63: #{custom-call.10} parent=61 // loop_pre_header
              _
            $region64: #{custom-call.10} parent=61 // loop_header
              %s197 = sphi 0, %s201
              %p198 = scmp.ge.s32.totalorder %s197, 1
              %s202 = sphi %s183, %s183
              %s203 = sphi %s188, %s188
            $region65: #{custom-call.10} parent=61 // loop_header_branch
              %200 = sbr.rel (%p198) target = $region69
            $region66: #{custom-call.10} parent=61 // loop_body
              %v204 = vld [vmem:[%s202] sm:$0xf]
              %205 = vst [vmem:[%s203] sm:$0xf] %v204
            $region67: #{custom-call.10} parent=61 // loop_footer
              %s201 = sadd.s32 1, %s197
            $region68: #{custom-call.10} parent=61 // loop_footer_branch
              %196 = sbr.rel target = $region64
            $region69: #{custom-call.10} parent=61 // loop_exit
              _
          $region62: #{custom-call.10} parent=53 // pred_fallthru
            _
        $region54: #{custom-call.10} parent=49 // pred_fallthru
          _
        %219 = vnop
      $region50: #{custom-call.10} parent=5 // pred_fallthru
        _
      %p220 = scmp.le.s32.totalorder 2, %s3
      // Predicated region
      $region81: #{custom-call.10} parent=5 // pred_check
        %p221 = pneg %p220
      $region82: #{custom-call.10} parent=5 // pred_check_branch
        %223 = sbr.rel (%p221) target = $region84
      $region83: #{custom-call.10} parent=5 // pred_region
        %s224 = ssub.s32 %s3, 2
        %s225 = sand.u32 %s9, 1
        %s226 = sand.u32 %s9, 1
        %s227 = smul.addr %s226, 4
        %s228 = scalar_lea.vmem [#allocation3], %s227
      $region84: #{custom-call.10} parent=5 // pred_fallthru
        _
    $region6: #{custom-call.10} parent=1 // loop_footer
      %s7 = sadd.s32 1, %s3
    $region7: #{custom-call.10} parent=1 // loop_footer_branch
      %2 = sbr.rel target = $region3
    $region8: #{custom-call.10} parent=1 // loop_exit
      _

// kernel: ds_r.1
$region0: #{ds_r.1}
  #allocation0 [shape = 'u32[]', space=smem, size = 0x4, offset = 0x4, fixed_abs, tag = 'smem constant byte address 0x4 - core index']
  #allocation1 [shape = 'u32[144,128]{1,0:T(1,128)}', space=vmem, size = 0x12000, scoped, tag = 'internal scratch']
  #allocation2 [shape = 'bf16[8,256]{1,0:T(8,128)(2,1)}', space=vmem, size = 0x1000, scoped, tag = 'scratch operand']
  #allocation3 [shape = 'f32[8,8]{1,0:T(8,128)}', space=vmem, size = 0x1000, scoped, tag = 'scratch operand']
  %s0 = inlined_call_operand.vmem [shape: f32[2,4,256], index: 0, kind: input, shape index: {}]
  %s1 = inlined_call_operand.vmem [shape: f32[2,1,256], index: 1, kind: input, shape index: {}]
  %s2 = inlined_call_operand.vmem [shape: f32[2,1,8,8], index: 2, kind: output, shape index: {}]
  %s3 = sld [smem:[#allocation0]]
  $region49: #{ds_r.1} parent=0
    _
  %s5 = ssub.s32 1, %s3
  %s6 = scalar_select 0, %s5, %s3
  loop: start=0, step=1, limit=4
  $region2: #{ds_r.1} parent=0 // loop_pre_header
    _
  $region3: #{ds_r.1} parent=0 // loop_header
    %s8 = sphi 0, %s12
    %p9 = scmp.ge.s32.totalorder %s8, 4
    %s15 = sphi 0, %s34
    %s16 = sphi 0, %s30
    %s17 = sphi 0, %s26
    %s18 = sphi 0, %s15
    %s19 = sphi 0, %s16
    %s20 = sphi 0, %s17
    %s21 = sphi 0, %s18
    %s22 = sphi 0, %s19
    %s23 = sphi 0, %s20
    %s45 = sphi 0, %s47
    %s48 = sphi 0, %s45
    %s49 = sphi 0, %s48
    %s65 = sphi 0, %s49
    %s79 = sphi 0, %s81
    %s82 = sphi 0, %s79
    %s83 = sphi 0, %s82
    %s99 = sphi 0, %s83
    %s107 = sphi 0, %s109
    %s110 = sphi 0, %s107
    %s111 = sphi 0, %s110
    %s127 = sphi 0, %s111
  $region4: #{ds_r.1} parent=0 // loop_header_branch
    %11 = sbr.rel (%p9) target = $region8
  $region5: #{ds_r.1} parent=0 // loop_body
    %s13 = ssub.s32 %s8, 1
    %s14 = ssub.s32 %s8, 2
    %s24 = sadd.s32 1, %s17
    %p25 = scmp.ge.s32.totalorder %s24, 1
    %s26 = scalar_select %p25, 0, %s24
    %s27 = sadd.s32 1, %s16
    %s28 = scalar_select %p25, %s27, %s16
    %p29 = scmp.ge.s32.totalorder %s28, 1
    %s30 = scalar_select %p29, 0, %s28
    %s31 = sadd.s32 1, %s15
    %s32 = scalar_select %p29, %s31, %s15
    %p33 = scmp.ge.s32.totalorder %s32, 2
    %s34 = scalar_select %p33, 0, %s32
    %s35 = sadd.s32 %s16, %s17
    %p36 = scmp.lt.s32.totalorder %s35, 0
    %s37 = scalar_select %p36, %s35, 0
    %s38 = sadd.s32 %s30, %s26
    %p39 = scmp.lt.s32.totalorder %s38, 0
    %s40 = scalar_select %p39, %s38, 0
    %s41 = ssub.s32 %s15, %s34
    %s42 = ssub.s32 %s37, %s40
    %s43 = sor.u32 %s41, %s42
    %p44 = scmp.eq.s32.totalorder %s43, 0
    %s46 = sadd.s32 %s45, 1
    %s47 = scalar_select %p44, %s45, %s46
    %p50 = pneg %p44
    %p51 = scmp.eq.s32.totalorder %s8, 1
    %p52 = por %p50, %p51
    %p53 = scmp.ne.s32.totalorder %s45, %s48
    %p54 = scmp.eq.s32.totalorder %s8, 0
    %p55 = por %p53, %p54
    %p56 = scmp.ne.s32.totalorder %s45, %s48
    %p57 = scmp.eq.s32.totalorder %s13, 1
    %p58 = por %p56, %p57
    %p59 = scmp.ne.s32.totalorder %s48, %s49
    %p60 = scmp.eq.s32.totalorder %s13, 0
    %p61 = por %p59, %p60
    %p62 = scmp.ne.s32.totalorder %s48, %s49
    %p63 = scmp.eq.s32.totalorder %s14, 1
    %p64 = por %p62, %p63
    %p66 = scmp.ne.s32.totalorder %s49, %s65
    %p67 = scmp.eq.s32.totalorder %s14, 0
    %p68 = por %p66, %p67
    %s69 = sadd.s32 %s16, %s17
    %p70 = scmp.lt.s32.totalorder %s69, 0
    %s71 = scalar_select %p70, %s69, 0
    %s72 = sadd.s32 %s30, %s26
    %p73 = scmp.lt.s32.totalorder %s72, 0
    %s74 = scalar_select %p73, %s72, 0
    %s75 = ssub.s32 %s15, %s34
    %s76 = ssub.s32 %s71, %s74
    %s77 = sor.u32 %s75, %s76
    %p78 = scmp.eq.s32.totalorder %s77, 0
    %s80 = sadd.s32 %s79, 1
    %s81 = scalar_select %p78, %s79, %s80
    %p84 = pneg %p78
    %p85 = scmp.eq.s32.totalorder %s8, 1
    %p86 = por %p84, %p85
    %p87 = scmp.ne.s32.totalorder %s79, %s82
    %p88 = scmp.eq.s32.totalorder %s8, 0
    %p89 = por %p87, %p88
    %p90 = scmp.ne.s32.totalorder %s79, %s82
    %p91 = scmp.eq.s32.totalorder %s13, 1
    %p92 = por %p90, %p91
    %p93 = scmp.ne.s32.totalorder %s82, %s83
    %p94 = scmp.eq.s32.totalorder %s13, 0
    %p95 = por %p93, %p94
    %p96 = scmp.ne.s32.totalorder %s82, %s83
    %p97 = scmp.eq.s32.totalorder %s14, 1
    %p98 = por %p96, %p97
    %p100 = scmp.ne.s32.totalorder %s83, %s99
    %p101 = scmp.eq.s32.totalorder %s14, 0
    %p102 = por %p100, %p101
    %s103 = ssub.s32 %s15, %s34
    %s104 = ssub.s32 %s16, %s30
    %s105 = sor.u32 %s103, %s104
    %p106 = scmp.eq.s32.totalorder %s105, 0
    %s108 = sadd.s32 %s107, 1
    %s109 = scalar_select %p106, %s107, %s108
    %p112 = pneg %p106
    %p113 = scmp.eq.s32.totalorder %s8, 1
    %p114 = por %p112, %p113
    %p115 = scmp.ne.s32.totalorder %s107, %s110
    %p116 = scmp.eq.s32.totalorder %s8, 0
    %p117 = por %p115, %p116
    %p118 = scmp.ne.s32.totalorder %s107, %s110
    %p119 = scmp.eq.s32.totalorder %s13, 1
    %p120 = por %p118, %p119
    %p121 = scmp.ne.s32.totalorder %s110, %s111
    %p122 = scmp.eq.s32.totalorder %s13, 0
    %p123 = por %p121, %p122
    %p124 = scmp.ne.s32.totalorder %s110, %s111
    %p125 = scmp.eq.s32.totalorder %s14, 1
    %p126 = por %p124, %p125
    %p128 = scmp.ne.s32.totalorder %s111, %s127
    %p129 = scmp.eq.s32.totalorder %s14, 0
    %p130 = por %p128, %p129
    %p131 = scmp.le.s32.totalorder 1, %s8
    %p132 = scmp.lt.s32.totalorder %s8, 3
    %p133 = pnand %p131, %p132
    %p134 = pneg %p133
    // Predicated region
    $region9: #{ds_r.1} parent=5 // pred_check
      _
    $region10: #{ds_r.1} parent=5 // pred_check_branch
      %136 = sbr.rel (%p133) target = $region12
    $region11: #{ds_r.1} parent=5 // pred_region
      %s137 = ssub.s32 %s8, 1
    $region12: #{ds_r.1} parent=5 // pred_fallthru
      _
    %p138 = scmp.lt.s32.totalorder %s8, 2
    // Predicated region
    $region13: #{ds_r.1} parent=5 // pred_check
      %p139 = pneg %p138
    $region14: #{ds_r.1} parent=5 // pred_check_branch
      %141 = sbr.rel (%p139) target = $region16
    $region15: #{ds_r.1} parent=5 // pred_region
      // Predicated region
      $region17: #{ds_r.1} parent=15 // pred_check
        %p142 = pneg %p55
      $region18: #{ds_r.1} parent=15 // pred_check_branch
        %144 = sbr.rel (%p142) target = $region20
      $region19: #{ds_r.1} parent=15 // pred_region
        %s145 = sadd.s32 %s16, %s17
        %p146 = scmp.lt.s32.totalorder %s145, 0
        %s147 = scalar_select %p146, %s145, 0
        %s148 = smul.u32 2, %s147
        %p149 = scmp.lt.s32.totalorder %s15, 1
        %s150 = scalar_select %p149, %s15, 1
        %p151 = scmp.lt.s32.totalorder %s148, 1
        %s152 = scalar_select %p151, %s148, 1
        %s153 = smul.addr %s150, 2
        %s154 = sadd.s32 %s152, %s153
        %s155 = smul.addr %s154, 4
        %s156 = scalar_lea.vmem %s0, %s155
        %s157 = sadd.s32 %s16, %s17
        %p158 = scmp.lt.s32.totalorder %s157, 0
        %s159 = scalar_select %p158, %s157, 0
        %s160 = smul.u32 2, %s159
      $region20: #{ds_r.1} parent=15 // pred_fallthru
        _
      // Predicated region
      $region21: #{ds_r.1} parent=15 // pred_check
        %p161 = pneg %p89
      $region22: #{ds_r.1} parent=15 // pred_check_branch
        %163 = sbr.rel (%p161) target = $region24
      $region23: #{ds_r.1} parent=15 // pred_region
        %s164 = sadd.s32 %s16, %s17
        %p165 = scmp.lt.s32.totalorder %s164, 0
        %s166 = scalar_select %p165, %s164, 0
        %s167 = smul.u32 2, %s166
        %p168 = scmp.lt.s32.totalorder %s15, 1
        %s169 = scalar_select %p168, %s15, 1
        %p170 = scmp.lt.s32.totalorder %s167, 1
        %s171 = scalar_select %p170, %s167, 1
        %s172 = smul.addr %s169, 2
        %s173 = sadd.s32 %s171, %s172
        %s174 = scalar_lea.vmem %s1, %s173
        %s175 = sadd.s32 %s16, %s17
        %p176 = scmp.lt.s32.totalorder %s175, 0
        %s177 = scalar_select %p176, %s175, 0
        %s178 = smul.u32 2, %s177
      $region24: #{ds_r.1} parent=15 // pred_fallthru
        _
    $region16: #{ds_r.1} parent=5 // pred_fallthru
      _
    %p179 = scmp.le.s32.totalorder 1, %s8
    %p180 = scmp.lt.s32.totalorder %s8, 3
    %p181 = pnand %p179, %p180
    %p182 = pneg %p181
    // Predicated region
    $region25: #{ds_r.1} parent=5 // pred_check
      _
    $region26: #{ds_r.1} parent=5 // pred_check_branch
      %184 = sbr.rel (%p181) target = $region28
    $region27: #{ds_r.1} parent=5 // pred_region
      %s185 = ssub.s32 %s8, 1
      %s186 = sadd.s32 %s19, %s20
      %p187 = scmp.lt.s32.totalorder %s186, 0
      %s188 = scalar_select %p187, %s186, 0
      %s189 = smul.u32 2, %s188
      %p190 = scmp.lt.s32.totalorder %s18, 1
      %s191 = scalar_select %p190, %s18, 1
      %p192 = scmp.lt.s32.totalorder %s189, 1
      %s193 = scalar_select %p192, %s189, 1
      %s194 = smul.addr %s191, 2
      %s195 = sadd.s32 %s193, %s194
      %s196 = smul.addr %s195, 4
      %s197 = scalar_lea.vmem %s0, %s196
      %p198 = pneg %p61
      %p199 = pneg %p58
      %s200 = sadd.s32 %s19, %s20
      %p201 = scmp.lt.s32.totalorder %s200, 0
      %s202 = scalar_select %p201, %s200, 0
      %s203 = smul.u32 2, %s202
      %p204 = scmp.lt.s32.totalorder %s18, 1
      %s205 = scalar_select %p204, %s18, 1
      %p206 = scmp.lt.s32.totalorder %s203, 1
      %s207 = scalar_select %p206, %s203, 1
      %s208 = smul.addr %s205, 2
      %s209 = sadd.s32 %s207, %s208
      %s210 = scalar_lea.vmem %s1, %s209
      %p211 = pneg %p95
      %p212 = pneg %p92
      %p213 = pneg %p123
      %p214 = pneg %p120
      %p215 = scmp.lt.s32.totalorder %s18, 1
      %s216 = scalar_select %p215, %s18, 1
      %p217 = scmp.lt.s32.totalorder %s19, 0
      %s218 = scalar_select %p217, %s19, 0
      %s219 = sadd.s32 %s218, %s216
      %s220 = smul.addr %s219, 8
      %s221 = scalar_lea.vmem %s2, %s220
      %s222 = sadd.s32 %s19, %s20
      %p223 = scmp.lt.s32.totalorder %s222, 0
      %s224 = scalar_select %p223, %s222, 0
      %s225 = smul.u32 2, %s224
      %p226 = scmp.lt.s32.totalorder %s18, 1
      %s227 = scalar_select %p226, %s18, 1
      %p228 = scmp.lt.s32.totalorder %s225, 1
      %s229 = scalar_select %p228, %s225, 1
      %s230 = smul.addr %s227, 2
      %s231 = sadd.s32 %s229, %s230
      %s232 = smul.addr %s231, 4
      %s233 = scalar_lea.vmem %s0, %s232
      %s234 = sadd.s32 %s19, %s20
      %p235 = scmp.lt.s32.totalorder %s234, 0
      %s236 = scalar_select %p235, %s234, 0
      %s237 = smul.u32 2, %s236
      %s238 = sadd.s32 %s19, %s20
      %p239 = scmp.lt.s32.totalorder %s238, 0
      %s240 = scalar_select %p239, %s238, 0
      %s241 = smul.u32 2, %s240
      %p242 = scmp.lt.s32.totalorder %s18, 1
      %s243 = scalar_select %p242, %s18, 1
      %p244 = scmp.lt.s32.totalorder %s241, 1
      %s245 = scalar_select %p244, %s241, 1
      %s246 = smul.addr %s243, 2
      %s247 = sadd.s32 %s245, %s246
      %s248 = scalar_lea.vmem %s1, %s247
      %s249 = sadd.s32 %s19, %s20
      %p250 = scmp.lt.s32.totalorder %s249, 0
      %s251 = scalar_select %p250, %s249, 0
      %s252 = smul.u32 2, %s251
      %p253 = scmp.lt.s32.totalorder %s18, 1
      %s254 = scalar_select %p253, %s18, 1
      %p255 = scmp.lt.s32.totalorder %s19, 0
      %s256 = scalar_select %p255, %s19, 0
      %s257 = sadd.s32 %s256, %s254
      %s258 = smul.addr %s257, 8
      %s259 = scalar_lea.vmem %s2, %s258
      %p262 = scmp.eq.s32.totalorder %s20, 0
      // Predicated region
      $region29: #{ds_r.1} parent=27 // pred_check
        %p263 = pneg %p262
      $region30: #{ds_r.1} parent=27 // pred_check_branch
        %265 = sbr.rel (%p263) target = $region32
      $region31: #{ds_r.1} parent=27 // pred_region
        %vm266 = vcmask 64512
        %267 = vst.msk [vmem:[#allocation3] sm:$0xff] %vm266, 0.0
        %vm268 = vcmask 1042434
        %vm269 = vsmask.f32 7946
        %vm270 = vmand %vm268, %vm269
        %vm271 = vcmask 1046534
        %vm272 = vsmask.f32 7962
        %vm273 = vmand %vm271, %vm272
        %vm274 = vmor %vm273, %vm270
        %v275 = vld [vmem:[#allocation2] sm:$0x44]
        %v276 = vsel %vm274, 1065369472, %v275
        %277 = vst [vmem:[#allocation2] sm:$0x44] %v276
        %278 = vst [vmem:[#allocation2] sm:$0x88] 0
      $region32: #{ds_r.1} parent=27 // pred_fallthru
        _
      %v279 = vld [vmem:[%s233] sm:$0xff]
      %v281 = vcombine.high %v279, %v279
      %v283 = vpack.c.bf16 %v279, %v279
      %v284 = vpack.c.bf16 %v281, %v281
      %v287 = vunpack.c.l.b16 %v283
      %v288 = vunpack.c.l.b16 %v284
      %v289 = vpack.c.b16 %v288, %v287
      %291 = vst [vmem:[#allocation2] sm:$0x33] %v289
      %v292 = vld [vmem:[%s248] sm:$0x3]
      %v294 = vlaneseq
      %v295 = vshrl.u32 %v294, 7
      %v296 = vsub.s32 0, %v295
      %v297 = vrot.slane %v292, %v296
      %v298 = vlaneseq
      %v299 = vshrl.u32 %v298, 7
      %v300 = vsub.s32 1, %v299
      %v301 = vrot.slane %v292, %v300
      %v304 = vpack.c.bf16 %v297, %v297
      %v305 = vpack.c.bf16 %v301, %v301
      %v308 = vunpack.c.l.b16 %v304
      %v309 = vunpack.c.l.b16 %v305
      %v310 = vpack.c.b16 %v309, %v308
      %v311 = vrot.slane %v310, 6
      %vm313 = vcmask 1042434
      %vm314 = vsmask.f32 2304
      %vm315 = vmand %vm313, %vm314
      %vm316 = vcmask 1046534
      %vm317 = vsmask.f32 6400
      %vm318 = vmand %vm316, %vm317
      %vm319 = vmor %vm318, %vm315
      %v320 = vld [vmem:[#allocation2] sm:$0x44]
      %v321 = vsel %vm319, %v311, %v320
      %322 = vst [vmem:[#allocation2] sm:$0x44] %v321
      %v323 = vld [vmem:[#allocation2] sm:$0xff]
      %v324 = vld [vmem:[#allocation3] sm:$0xff]
      %v326 = vunpack.c.l.b16 %v323
      %v327 = vunpack.c.h.b16 %v323
      %v328 = vpack.c.b16 %v326, %v326
      %v329 = vpack.c.b16 %v327, %v327
      %332 = vmatprep.subr.bf16.mxu0 %v329
      %333 = vmatpush1.bf16.xpose.msra.mxu0 %v328
      %334 = vmatprep.subr.bf16.mxu0 0
      %335 = vmatpush1.bf16.xpose.msra.mxu0 0
      %336 = vmatprep.subr.bf16.mxu0 0
      %337 = vmatpush1.bf16.xpose.msra.mxu0 0
      %338 = vmatprep.subr.bf16.mxu0 0
      %339 = vmatpush1.bf16.xpose.msra.mxu0 0
      %340 = vmatprep.subr.bf16.mxu0 0
      %341 = vmatpush1.bf16.xpose.msra.mxu0 0
      %342 = vmatprep.subr.bf16.mxu0 0
      %343 = vmatpush1.bf16.xpose.msra.mxu0 0
      %344 = vmatprep.subr.bf16.mxu0 0
      %345 = vmatpush1.bf16.xpose.msra.mxu0 0
      %346 = vmatprep.subr.bf16.mxu0 0
      %347 = vmatpush1.bf16.xpose.msra.mxu0 0
      %348 = vmatprep.subr.bf16.mxu0 0
      %349 = vmatpush1.bf16.xpose.msra.mxu0 0
      %350 = vmatprep.subr.bf16.mxu0 0
      %351 = vmatpush1.bf16.xpose.msra.mxu0 0
      %352 = vmatprep.subr.bf16.mxu0 0
      %353 = vmatpush1.bf16.xpose.msra.mxu0 0
      %354 = vmatprep.subr.bf16.mxu0 0
      %355 = vmatpush1.bf16.xpose.msra.mxu0 0
      %356 = vmatprep.subr.bf16.mxu0 0
      %357 = vmatpush1.bf16.xpose.msra.mxu0 0
      %358 = vmatprep.subr.bf16.mxu0 0
      %359 = vmatpush1.bf16.xpose.msra.mxu0 0
      %360 = vmatprep.subr.bf16.mxu0 0
      %361 = vmatpush1.bf16.xpose.msra.mxu0 0
      %362 = vmatprep.subr.bf16.mxu0 0
      %363 = vmatpush1.bf16.xpose.msra.mxu0 0
      %364 = vmatprep.mubr.bf16.mxu0 %v329
      %365 = vmatmul.mubr.bf16.gmra.mrb[0].mxu0 %v328
      %v366 = vpop.f32.mrb[0].mxu0
      %v367 = vadd.f32 0.0, %v366
      %v368 = vpop.f32.mrb[0].mxu0
      %v369 = vpop.f32.mrb[0].mxu0
      %v370 = vpop.f32.mrb[0].mxu0
      %371 = vdwg.mxu0
      %v372 = vadd.f32 %v324, %v367
      %vm373 = vcmask 64512
      %374 = vst.msk [vmem:[#allocation3] sm:$0xff] %vm373, %v372
      // Predicated region
      $region33: #{ds_r.1} parent=27 // pred_check
        %p375 = pneg %p262
      $region34: #{ds_r.1} parent=27 // pred_check_branch
        %377 = sbr.rel (%p375) target = $region36
      $region35: #{ds_r.1} parent=27 // pred_region
        %v378 = vld [vmem:[#allocation3] sm:$0xff]
        %379 = vst.msk [vmem:[%s259] sm:$0xff] %vm373, %v378
      $region36: #{ds_r.1} parent=27 // pred_fallthru
        _
      %p380 = scmp.lt.s32.totalorder %s18, 1
      %s381 = scalar_select %p380, %s18, 1
      %p382 = scmp.lt.s32.totalorder %s19, 0
      %s383 = scalar_select %p382, %s19, 0
      %s384 = sadd.s32 %s383, %s381
      %s385 = smul.addr %s384, 8
      %s386 = scalar_lea.vmem %s2, %s385
      // Predicated region
      $region37: #{ds_r.1} parent=27 // pred_check
        %p387 = pneg %p120
      $region38: #{ds_r.1} parent=27 // pred_check_branch
        %389 = sbr.rel (%p387) target = $region40
      $region39: #{ds_r.1} parent=27 // pred_region
        _
      $region40: #{ds_r.1} parent=27 // pred_fallthru
        _
    $region28: #{ds_r.1} parent=5 // pred_fallthru
      _
    %p390 = scmp.le.s32.totalorder 2, %s8
    // Predicated region
    $region41: #{ds_r.1} parent=5 // pred_check
      %p391 = pneg %p390
    $region42: #{ds_r.1} parent=5 // pred_check_branch
      %393 = sbr.rel (%p391) target = $region44
    $region43: #{ds_r.1} parent=5 // pred_region
      %s394 = ssub.s32 %s8, 2
      // Predicated region
      $region45: #{ds_r.1} parent=43 // pred_check
        %p395 = pneg %p126
      $region46: #{ds_r.1} parent=43 // pred_check_branch
        %397 = sbr.rel (%p395) target = $region48
      $region47: #{ds_r.1} parent=43 // pred_region
        %p398 = scmp.lt.s32.totalorder %s21, 1
        %s399 = scalar_select %p398, %s21, 1
        %p400 = scmp.lt.s32.totalorder %s22, 0
        %s401 = scalar_select %p400, %s22, 0
        %s402 = sadd.s32 %s401, %s399
        %s403 = smul.addr %s402, 8
        %s404 = scalar_lea.vmem %s2, %s403
      $region48: #{ds_r.1} parent=43 // pred_fallthru
        _
    $region44: #{ds_r.1} parent=5 // pred_fallthru
      _
  $region6: #{ds_r.1} parent=0 // loop_footer
    %s12 = sadd.s32 1, %s8
  $region7: #{ds_r.1} parent=0 // loop_footer_branch
    %7 = sbr.rel target = $region3
  $region8: #{ds_r.1} parent=0 // loop_exit
    _

</llo_original>
